<compile_context>
chip_gen: v5e
topology: v5e:2x2
jax: 0.10.0
libtpu: 0.0.40
codegen_flags: <defaults>
</compile_context>

<pallas_src>
import functools

import numpy as np
import jax
import jax.numpy as jnp
from jax import lax
from jax.experimental import pallas as pl
from jax.experimental.pallas import tpu as pltpu

HALF_LOG_2PI = 0.5 * float(np.log(2.0 * np.pi))


def _round_up(x, m):
    return ((x + m - 1) // m) * m


def _elu(x):
    # exp only ever sees non-positive inputs -> no transient inf generated on the EUP.
    return jnp.where(x > 0, x, jnp.exp(jnp.minimum(x, 0.0)) - 1.0)


def _mm_f32(x, w):
    return jnp.dot(x, w, preferred_element_type=jnp.float32)


def _mm_w(x, w):
    # w is already stored in the matmul dtype (bf16 at production scale); cast only the
    # activation operand at the matmul so elementwise math stays f32 (v5e has no bf16 VPU).
    return jnp.dot(x.astype(w.dtype), w, preferred_element_type=jnp.float32)


def _vmem_limit(bytes_needed):
    # Explicit scoped-VMEM limit (defaults: 16 MiB v5e / 32 MiB v6e,v7x).
    # NOTE(v7x): physical VMEM is 64 MiB per TC; at production shapes keep this <= ~56 MiB.
    return int(min(max(32 * 2**20, 2 * bytes_needed + 8 * 2**20), 128 * 2**20))


# --------------------------------------------------------------------------------------
# Kernel 1: time-chunked serial GRU recurrence (batch-shardable across TensorCores).
# --------------------------------------------------------------------------------------
def rar_recurrence_kernel(
        emb_ref, act_ref,
        we_ref, wa_ref, wh_ref, bi_ref, bh_ref,
        ew1_ref, eb1_ref, ew2_ref, eb2_ref, ew3_ref, eb3_ref,
        st_ref,
        h_ref, ga_ref, ge_ref,
        *, Tc, Bs, H, warm_up):
    c = pl.program_id(1)                           # time-chunk index ("arbitrary" axis)

    @pl.when(c == 0)
    def _():
        h_ref[...] = jnp.zeros_like(h_ref)         # fresh hidden state per batch shard

    # Hoisted, batched input->hidden projections for this chunk (off the serial path;
    # overlapped with the previous chunk's recurrence by the BlockSpec pipeline).
    act = act_ref[...].reshape(Tc * Bs, -1)
    ga_ref[...] = _mm_f32(act, wa_ref[...]) + bi_ref[...]

    # emb projection only needed for teacher-forced steps (i <= warm_up): skip the matmul
    # (and leave the scratch untouched) for chunks fully inside the feedback region.
    @pl.when(c * Tc <= warm_up)
    def _():
        emb = emb_ref[...].reshape(Tc * Bs, -1)
        ge_ref[...] = _mm_f32(emb, we_ref[...])

    # Loop-invariant weights, loaded once.
    we = we_ref[...]
    wh = wh_ref[...]
    bh = bh_ref[...]
    ew1 = ew1_ref[...]; eb1 = eb1_ref[...]
    ew2 = ew2_ref[...]; eb2 = eb2_ref[...]
    ew3 = ew3_ref[...]; eb3 = eb3_ref[...]

    def gru_update(h, gi):
        # PyTorch GRUCell semantics; gi already holds x @ W_ih + b_ih, gates fused (r|z|n).
        hh = _mm_f32(h, wh) + bh                           # single (Bs,H)@(H,3H) matmul
        r = jax.nn.sigmoid(gi[:, 0:H] + hh[:, 0:H])
        z = jax.nn.sigmoid(gi[:, H:2 * H] + hh[:, H:2 * H])
        n = jnp.tanh(gi[:, 2 * H:] + r * hh[:, 2 * H:])
        return (1.0 - z) * n + z * h

    def emb_mode(h):
        h1 = _elu(_mm_f32(h, ew1) + eb1)
        h2 = _elu(_mm_f32(h1, ew2) + eb2)
        return _mm_f32(h2, ew3) + eb3

    def step(j, h):
        i = c * Tc + j                                     # global time step
        row = pl.multiple_of(j * Bs, Bs)
        ge_j = lax.cond(
            i <= warm_up,
            lambda h_: ge_ref[pl.ds(row, Bs), :],          # teacher forcing (precomputed)
            lambda h_: _mm_f32(emb_mode(h_), we),          # feedback: decoder mode -> proj
            h)
        h_new = gru_update(h, ge_j + ga_ref[pl.ds(row, Bs), :])
        st_ref[j] = h_new
        return h_new

    # Partial unroll keeps LLO scheduling visibility without blowing up vreg live ranges.
    h_ref[...] = lax.fori_loop(0, Tc, step, h_ref[...], unroll=min(Tc, 8))


# --------------------------------------------------------------------------------------
# Kernel 2: batched MLP decoders + per-block masked NLL partial sums (row-parallel).
# --------------------------------------------------------------------------------------
def rar_decoder_kernel(st_ref, embt_ref, rewt_ref,
                       w1_ref, b1_ref, ew2_ref, eb2_ref, ew3_ref, eb3_ref,
                       rw2_ref, rb2_ref, rw3_ref, rb3_ref,
                       ep_ref, rp_ref, le_ref, lr_ref,
                       *, F, E, M, bm):
    g = pl.program_id(0)
    s = st_ref[...]                                              # (bm, H)

    # Fused first layer of both heads: one s @ [ew1 | rw1] (H, 2F) matmul.
    h1g1 = _elu(_mm_w(s, w1_ref[...]) + b1_ref[...])
    h1 = h1g1[:, :F]
    g1 = h1g1[:, F:]

    h2 = _elu(_mm_w(h1, ew2_ref[...]) + eb2_ref[...])
    ep = _mm_w(h2, ew3_ref[...]) + eb3_ref[...]                  # (bm, E_pad), lane-dense

    g2 = _elu(_mm_w(g1, rw2_ref[...]) + rb2_ref[...])
    rp = _mm_w(g2, rw3_ref[...]) + rb3_ref[...]                  # (bm, 128)
    rp1 = rp[:, 0:1]

    ep_ref[...] = ep                                             # predictions (f32; bf16 is
    rp_ref[...] = rp1                                            # a further writeback saving)

    # Per-lane partial sums of 0.5*(x - mu)^2; grid-padding rows (>= M) masked out.
    valid = (lax.broadcasted_iota(jnp.int32, (bm, 1), 0) + g * bm < M).astype(jnp.float32)
    de = (ep[:, :E] - embt_ref[...]) * valid
    dr = (rp1 - rewt_ref[...]) * valid
    le_ref[0] = 0.5 * jnp.sum(de * de, axis=0, keepdims=True)
    lr_ref[0] = 0.5 * jnp.sum(dr * dr, axis=0, keepdims=True)


# --------------------------------------------------------------------------------------
# Wrapper
# --------------------------------------------------------------------------------------
def rar_forward(params, emb, action, reward, *, warm_up,
                chunk_steps=None, batch_shards=1, decode_block_rows=256,
                decoder_matmul_dtype=jnp.bfloat16):
    T, B, E = emb.shape
    A = action.shape[-1]
    H = params['wh_r'].shape[0]
    F = params['ew1'].shape[1]
    M = T * B
    assert B % 8 == 0, "batch must be a multiple of 8 (sublane width)"
    # H % 128 == 0 and F % 128 == 0 recommended so fused-gate / fused-head slices stay
    # lane-aligned (they are correct either way).

    # ------------------------------ recurrence tiling -------------------------------
    if batch_shards < 1 or B % batch_shards or (B // batch_shards) % 8:
        batch_shards = 1                         # shard only if each shard stays 8-aligned
    Bs = B // batch_shards
    if chunk_steps is None:
        chunk_steps = max(d for d in range(1, min(T, 8) + 1) if T % d == 0)
    assert T % chunk_steps == 0, "chunk_steps must divide T"
    Tc = chunk_steps
    C = T // Tc

    # Per-gate GRU weights fused into single (., 3H) matrices (r|z|n).
    we_cat = jnp.concatenate([params['we_r'], params['we_z'], params['we_n']], axis=1)
    wa_cat = jnp.concatenate([params['wa_r'], params['wa_z'], params['wa_n']], axis=1)
    wh_cat = jnp.concatenate([params['wh_r'], params['wh_z'], params['wh_n']], axis=1)
    bi_cat = jnp.concatenate([params['bi_r'], params['bi_z'], params['bi_n']], axis=1)
    bh_cat = jnp.concatenate([params['bh_r'], params['bh_z'], params['bh_n']], axis=1)

    # Shift inputs by one step so that every state (including state_0) is the same update:
    #   state[i] = GRU(cat(x_i, a_i), state[i-1]),  state[-1] = 0,
    #   x_i = emb[i-1] (teacher, i <= warm_up) else emb_pre(state[i-1]).mode(),
    #   a_i = action[i-1],  with x_0 = emb[0], a_0 = 0.
    emb_shift = jnp.concatenate([emb[:1], emb[:-1]], axis=0)
    act_shift = jnp.concatenate([jnp.zeros_like(action[:1]), action[:-1]], axis=0)

    rec_inputs = [emb_shift, act_shift, we_cat, wa_cat, wh_cat, bi_cat, bh_cat,
                  params['ew1'], params['eb1'], params['ew2'], params['eb2'],
                  params['ew3'], params['eb3']]

    def const_spec2(x):
        nd = x.ndim
        return pl.BlockSpec(x.shape, lambda s, c, _nd=nd: (0,) * _nd)

    rec_in_specs = ([pl.BlockSpec((Tc, Bs, E), lambda s, c: (c, s, 0)),
                     pl.BlockSpec((Tc, Bs, A), lambda s, c: (c, s, 0))]
                    + [const_spec2(x) for x in rec_inputs[2:]])

    rec_w_bytes = sum(int(np.prod(x.shape)) * 4 for x in rec_inputs[2:])
    rec_vmem = (2 * 4 * Tc * Bs * (E + A + H) + 2 * rec_w_bytes
                + 4 * (Bs * H + 2 * Tc * Bs * 3 * H))

    states = pl.pallas_call(
        functools.partial(rar_recurrence_kernel, Tc=Tc, Bs=Bs, H=H, warm_up=warm_up),
        grid_spec=pltpu.PrefetchScalarGridSpec(
            num_scalar_prefetch=0,
            grid=(batch_shards, C),
            in_specs=rec_in_specs,
            out_specs=pl.BlockSpec((Tc, Bs, H), lambda s, c: (c, s, 0)),
            scratch_shapes=[pltpu.VMEM((Bs, H), jnp.float32),          # carried hidden
                            pltpu.VMEM((Tc * Bs, 3 * H), jnp.float32),  # ga (action proj)
                            pltpu.VMEM((Tc * Bs, 3 * H), jnp.float32)]),  # ge (emb proj)
        out_shape=jax.ShapeDtypeStruct((T, B, H), jnp.float32),
        compiler_params=pltpu.CompilerParams(
            dimension_semantics=("parallel", "arbitrary"),
            vmem_limit_bytes=_vmem_limit(rec_vmem)),
    )(*rec_inputs)

    # ------------------------------ batched decoders --------------------------------
    E_pad = _round_up(E, 128)
    R_pad = 128
    bm = max(8, (decode_block_rows // 8) * 8)
    M_pad = _round_up(M, bm)
    G = M_pad // bm

    states_flat = states.reshape(M, H)
    emb_t = emb.reshape(M, E)                    # unpadded targets: no E_pad round-trip
    rew_t = reward.reshape(M, 1)
    if M_pad != M:
        pad = ((0, M_pad - M), (0, 0))
        states_in = jnp.pad(states_flat, pad)
        emb_t = jnp.pad(emb_t, pad)
        rew_t = jnp.pad(rew_t, pad)
    else:
        states_in = states_flat

    wdt = decoder_matmul_dtype
    w1_cat = jnp.concatenate([params['ew1'], params['rw1']], axis=1).astype(wdt)
    b1_cat = jnp.concatenate([params['eb1'], params['rb1']], axis=1)
    ew3_p = jnp.pad(params['ew3'], ((0, 0), (0, E_pad - E))).astype(wdt)
    eb3_p = jnp.pad(params['eb3'], ((0, 0), (0, E_pad - E)))
    rw3_p = jnp.pad(params['rw3'], ((0, 0), (0, R_pad - 1))).astype(wdt)
    rb3_p = jnp.pad(params['rb3'], ((0, 0), (0, R_pad - 1)))
    dec_w = [w1_cat, b1_cat, params['ew2'].astype(wdt), params['eb2'], ew3_p, eb3_p,
             params['rw2'].astype(wdt), params['rb2'], rw3_p, rb3_p]

    def const_spec1(x):
        nd = x.ndim
        return pl.BlockSpec(x.shape, lambda g, _nd=nd: (0,) * _nd)

    dec_in_specs = ([pl.BlockSpec((bm, H), lambda g: (g, 0)),
                     pl.BlockSpec((bm, E), lambda g: (g, 0)),
                     pl.BlockSpec((bm, 1), lambda g: (g, 0))]
                    + [const_spec1(w) for w in dec_w])
    dec_out_specs = [pl.BlockSpec((bm, E_pad), lambda g: (g, 0)),
                     pl.BlockSpec((bm, 1), lambda g: (g, 0)),
                     pl.BlockSpec((1, 1, E), lambda g: (g, 0, 0)),
                     pl.BlockSpec((1, 1, 1), lambda g: (g, 0, 0))]

    dec_block_bytes = 4 * (bm * (H + E + 1 + E_pad + 1) + E + 1)
    dec_w_bytes = sum(int(np.prod(w.shape)) * w.dtype.itemsize for w in dec_w)
    dec_vmem = 2 * (dec_block_bytes + dec_w_bytes)

    ep_pad, rp, loss_e, loss_r = pl.pallas_call(
        functools.partial(rar_decoder_kernel, F=F, E=E, M=M, bm=bm),
        grid_spec=pltpu.PrefetchScalarGridSpec(
            num_scalar_prefetch=0,
            grid=(G,),
            in_specs=dec_in_specs,
            out_specs=dec_out_specs),
        out_shape=(jax.ShapeDtypeStruct((M_pad, E_pad), jnp.float32),
                   jax.ShapeDtypeStruct((M_pad, 1), jnp.float32),
                   jax.ShapeDtypeStruct((G, 1, E), jnp.float32),
                   jax.ShapeDtypeStruct((G, 1, 1), jnp.float32)),
        compiler_params=pltpu.CompilerParams(
            dimension_semantics=("parallel",),
            vmem_limit_bytes=_vmem_limit(dec_vmem)),
    )(states_in, emb_t, rew_t, *dec_w)

    # Tiny epilogue: cross-lane reduce + analytic Gaussian constant + normalization.
    scale = 1.0 / M
    emb_loss = (jnp.sum(loss_e) + M * E * HALF_LOG_2PI) * scale
    rew_loss = (jnp.sum(loss_r) + M * 1 * HALF_LOG_2PI) * scale
    loss = emb_loss + rew_loss

    prediction = {
        'state': states,                                   # (T, B, H)
        'emb': ep_pad[:M, :E].reshape(T, B, E),
        'reward': rp[:M].reshape(T, B, 1),
    }
    info = {'emb_loss': emb_loss, 'reward_loss': rew_loss, 'loss': loss}
    return loss, prediction, info


# --------------------------------------------------------------------------------------
# Pure-JAX reference (mirrors RAR.forward) and parameter init
# --------------------------------------------------------------------------------------
def rar_reference(params, emb, action, reward, warm_up):
    T, B, E = emb.shape
    H = params['wh_r'].shape[0]
    p = params
    hp = jax.lax.Precision.HIGHEST

    def dot(a, b):
        return jnp.dot(a, b, precision=hp)

    def gru(x_e, x_a, h):
        r = jax.nn.sigmoid(dot(x_e, p['we_r']) + dot(x_a, p['wa_r']) + p['bi_r']
                           + dot(h, p['wh_r']) + p['bh_r'])
        z = jax.nn.sigmoid(dot(x_e, p['we_z']) + dot(x_a, p['wa_z']) + p['bi_z']
                           + dot(h, p['wh_z']) + p['bh_z'])
        n = jnp.tanh(dot(x_e, p['we_n']) + dot(x_a, p['wa_n']) + p['bi_n']
                     + r * (dot(h, p['wh_n']) + p['bh_n']))
        return (1.0 - z) * n + z * h

    def mlp(x, pre):
        h = _elu(dot(x, p[pre + 'w1']) + p[pre + 'b1'])
        h = _elu(dot(h, p[pre + 'w2']) + p[pre + 'b2'])
        return dot(h, p[pre + 'w3']) + p[pre + 'b3']

    states = []
    state = gru(emb[0], jnp.zeros_like(action[0]), jnp.zeros((B, H), jnp.float32))
    for i in range(T):
        states.append(state)
        e_mode = mlp(state, 'e')
        x_e = emb[i] if i < warm_up else e_mode
        state = gru(x_e, action[i], state)
    states = jnp.stack(states)                              # (T, B, H)
    flat = states.reshape(T * B, H)
    e_mean = mlp(flat, 'e')
    r_mean = mlp(flat, 'r')
    emb_loss = jnp.sum(0.5 * (emb.reshape(T * B, E) - e_mean) ** 2 + HALF_LOG_2PI) / (T * B)
    rew_loss = jnp.sum(0.5 * (reward.reshape(T * B, 1) - r_mean) ** 2 + HALF_LOG_2PI) / (T * B)
    return states, e_mean.reshape(T, B, E), r_mean.reshape(T, B, 1), emb_loss, rew_loss


def init_params(key, E, A, H, F):
    keys = iter(jax.random.split(key, 40))

    def lin(fin, fout):
        return jax.random.normal(next(keys), (fin, fout), jnp.float32) / np.sqrt(fin)

    def bias(n):
        return 0.05 * jax.random.normal(next(keys), (1, n), jnp.float32)

    p = {}
    # GRUCell weights, stored transposed, split per gate (r, z, n) and per input block
    # (emb | action) — mathematically identical to torch's cat([emb, action]) layout.
    for g in ('r', 'z', 'n'):
        p[f'we_{g}'] = lin(E, H)
        p[f'wa_{g}'] = lin(A, H)
        p[f'wh_{g}'] = lin(H, H)
        p[f'bi_{g}'] = bias(H)
        p[f'bh_{g}'] = bias(H)
    # emb_pre MLPDecoder (hidden_layers=2, features=F, elu, fix_std -> Normal(mean, 1))
    p['ew1'] = lin(H, F); p['eb1'] = bias(F)
    p['ew2'] = lin(F, F); p['eb2'] = bias(F)
    p['ew3'] = lin(F, E); p['eb3'] = bias(E)
    # reward_pre MLPDecoder (output dim 1)
    p['rw1'] = lin(H, F); p['rb1'] = bias(F)
    p['rw2'] = lin(F, F); p['rb2'] = bias(F)
    p['rw3'] = lin(F, 1); p['rb3'] = bias(1)
    return p


if __name__ == "__main__":
    # T=9 steps, B=16, emb_dim=16, action_dim=4, hidden_dim=128, features=128.
    # warm_up=4 < T exercises teacher-forced, mixed and feedback-only time chunks;
    # chunk_steps=3 exercises the chunked hidden-state carry; batch_shards=2 exercises the
    # parallel batch-shard axis; decode_block_rows=32 forces M=144 -> M_pad=160 so the
    # padded-row loss mask is exercised too.
    T, B, E, A, H, F = 9, 16, 16, 4, 128, 128
    warm_up = 4

    key = jax.random.PRNGKey(0)
    k_emb, k_act, k_rew, k_par = jax.random.split(key, 4)
    emb = jax.random.normal(k_emb, (T, B, E), jnp.float32)
    action = jax.random.normal(k_act, (T, B, A), jnp.float32)
    reward = jax.random.normal(k_rew, (T, B, 1), jnp.float32)
    params = init_params(k_par, E, A, H, F)

    r_states, r_emb, r_rew, r_el, r_rl = rar_reference(params, emb, action, reward, warm_up)

    def run_and_check(dec_dtype, tol_dec):
        loss, prediction, info = rar_forward(
            params, emb, action, reward, warm_up=warm_up,
            chunk_steps=3, batch_shards=2, decode_block_rows=32,
            decoder_matmul_dtype=dec_dtype)
        jax.block_until_ready(loss)
        jax.block_until_ready(prediction)
        # recurrence is always f32 -> tight state check
        assert np.allclose(prediction['state'], r_states, rtol=1e-2, atol=1e-2)
        assert np.allclose(prediction['emb'], r_emb, rtol=tol_dec, atol=tol_dec)
        assert np.allclose(prediction['reward'], r_rew, rtol=tol_dec, atol=tol_dec)
        assert np.allclose(info['emb_loss'], r_el, rtol=tol_dec, atol=tol_dec)
        assert np.allclose(info['reward_loss'], r_rl, rtol=tol_dec, atol=tol_dec)
        assert np.allclose(loss, r_el + r_rl, rtol=tol_dec, atol=tol_dec)

    run_and_check(jnp.float32, 1e-2)    # full-precision decoder path
    run_and_check(jnp.bfloat16, 6e-2)   # production (bf16-operand MXU) decoder path

    print("KERNEL_OK")
</pallas_src>

<mosaic_0001>
module attributes {stable_mosaic.version = 11 : i64} {
  func.func @rar_recurrence_kernel(%arg0: i32, %arg1: i32, %arg2: memref<3x8x16xf32, #tpu.memory_space<vmem>>, %arg3: memref<3x8x4xf32, #tpu.memory_space<vmem>>, %arg4: memref<16x384xf32, #tpu.memory_space<vmem>>, %arg5: memref<4x384xf32, #tpu.memory_space<vmem>>, %arg6: memref<128x384xf32, #tpu.memory_space<vmem>>, %arg7: memref<1x384xf32, #tpu.memory_space<vmem>>, %arg8: memref<1x384xf32, #tpu.memory_space<vmem>>, %arg9: memref<128x128xf32, #tpu.memory_space<vmem>>, %arg10: memref<1x128xf32, #tpu.memory_space<vmem>>, %arg11: memref<128x128xf32, #tpu.memory_space<vmem>>, %arg12: memref<1x128xf32, #tpu.memory_space<vmem>>, %arg13: memref<128x16xf32, #tpu.memory_space<vmem>>, %arg14: memref<1x16xf32, #tpu.memory_space<vmem>>, %arg15: memref<3x8x128xf32, #tpu.memory_space<vmem>>, %arg16: memref<8x128xf32, #tpu.memory_space<vmem>>, %arg17: memref<24x384xf32, #tpu.memory_space<vmem>>, %arg18: memref<24x384xf32, #tpu.memory_space<vmem>>) attributes {dimension_semantics = [#tpu.dimension_semantics<parallel>, #tpu.dimension_semantics<arbitrary>], iteration_bounds = array<i64: 2, 3>, scalar_prefetch = 0 : i64, scratch_operands = 3 : i64, tpu.core_type = #tpu.core_type<tc>, window_params = [{transform_indices = @transform_0, window_bounds = array<i64: 3, 8, 16>}, {transform_indices = @transform_1, window_bounds = array<i64: 3, 8, 4>}, {pipeline_mode = #tpu.pipeline_mode<synchronous>, transform_indices = @transform_2, window_bounds = array<i64: 16, 384>}, {pipeline_mode = #tpu.pipeline_mode<synchronous>, transform_indices = @transform_3, window_bounds = array<i64: 4, 384>}, {pipeline_mode = #tpu.pipeline_mode<synchronous>, transform_indices = @transform_4, window_bounds = array<i64: 128, 384>}, {pipeline_mode = #tpu.pipeline_mode<synchronous>, transform_indices = @transform_5, window_bounds = array<i64: 1, 384>}, {pipeline_mode = #tpu.pipeline_mode<synchronous>, transform_indices = @transform_6, window_bounds = array<i64: 1, 384>}, {pipeline_mode = #tpu.pipeline_mode<synchronous>, transform_indices = @transform_7, window_bounds = array<i64: 128, 128>}, {pipeline_mode = #tpu.pipeline_mode<synchronous>, transform_indices = @transform_8, window_bounds = array<i64: 1, 128>}, {pipeline_mode = #tpu.pipeline_mode<synchronous>, transform_indices = @transform_9, window_bounds = array<i64: 128, 128>}, {pipeline_mode = #tpu.pipeline_mode<synchronous>, transform_indices = @transform_10, window_bounds = array<i64: 1, 128>}, {pipeline_mode = #tpu.pipeline_mode<synchronous>, transform_indices = @transform_11, window_bounds = array<i64: 128, 16>}, {pipeline_mode = #tpu.pipeline_mode<synchronous>, transform_indices = @transform_12, window_bounds = array<i64: 1, 16>}, {transform_indices = @transform_13, window_bounds = array<i64: 3, 8, 128>}]} {
    %c0_i32 = arith.constant 0 : i32
    %0 = arith.cmpi eq, %arg1, %c0_i32 : i32
    %1 = arith.extui %0 : i1 to i32
    %c0_i32_0 = arith.constant 0 : i32
    %2 = arith.cmpi ne, %1, %c0_i32_0 : i32
    scf.if %2 {
      %cst_66 = arith.constant 0.000000e+00 : f32
      %158 = vector.broadcast %cst_66 : f32 to vector<8x128xf32>
      %c0_67 = arith.constant 0 : index
      %c0_68 = arith.constant 0 : index
      %159 = vector.load %arg16[%c0_67, %c0_68] : memref<8x128xf32, #tpu.memory_space<vmem>>, vector<8x128xf32>
      tpu.vector_store %arg16[%c0_67, %c0_68], %158 {strides = array<i32>} : memref<8x128xf32, #tpu.memory_space<vmem>>, vector<8x128xf32>,
    } else {
    }
    %c0 = arith.constant 0 : index
    %c0_1 = arith.constant 0 : index
    %c0_2 = arith.constant 0 : index
    %3 = vector.load %arg3[%c0, %c0_1, %c0_2] : memref<3x8x4xf32, #tpu.memory_space<vmem>>, vector<3x8x4xf32>
    %4 = vector.shape_cast %3 : vector<3x8x4xf32> to vector<24x4xf32>
    %c0_3 = arith.constant 0 : index
    %c0_4 = arith.constant 0 : index
    %5 = vector.load %arg5[%c0_3, %c0_4] : memref<4x384xf32, #tpu.memory_space<vmem>>, vector<4x384xf32>
    %cst = arith.constant dense<0.000000e+00> : vector<24x384xf32>
    %6 = tpu.matmul %4, %5, %cst {dimension_numbers = #tpu.dot_dimension_numbers<[1], [0], [0], [1], [0, 0, 1, 1], [], []>} : vector<24x4xf32>, vector<4x384xf32>, vector<24x384xf32> -> vector<24x384xf32>
    %c0_5 = arith.constant 0 : index
    %c0_6 = arith.constant 0 : index
    %7 = vector.load %arg7[%c0_5, %c0_6] : memref<1x384xf32, #tpu.memory_space<vmem>>, vector<1x384xf32>
    %8 = vector.broadcast %7 : vector<1x384xf32> to vector<24x384xf32>
    %9 = arith.addf %6, %8 : vector<24x384xf32>
    %c0_7 = arith.constant 0 : index
    %c0_8 = arith.constant 0 : index
    %10 = vector.load %arg17[%c0_7, %c0_8] : memref<24x384xf32, #tpu.memory_space<vmem>>, vector<24x384xf32>
    tpu.vector_store %arg17[%c0_7, %c0_8], %9 {strides = array<i32>} : memref<24x384xf32, #tpu.memory_space<vmem>>, vector<24x384xf32>,
    %c3_i32 = arith.constant 3 : i32
    %11 = arith.muli %arg1, %c3_i32 : i32
    %c4_i32 = arith.constant 4 : i32
    %12 = arith.cmpi sle, %11, %c4_i32 : i32
    %13 = arith.extui %12 : i1 to i32
    %c0_i32_9 = arith.constant 0 : i32
    %14 = arith.cmpi ne, %13, %c0_i32_9 : i32
    scf.if %14 {
      %c0_66 = arith.constant 0 : index
      %c0_67 = arith.constant 0 : index
      %c0_68 = arith.constant 0 : index
      %158 = vector.load %arg2[%c0_66, %c0_67, %c0_68] : memref<3x8x16xf32, #tpu.memory_space<vmem>>, vector<3x8x16xf32>
      %159 = vector.shape_cast %158 : vector<3x8x16xf32> to vector<24x16xf32>
      %c0_69 = arith.constant 0 : index
      %c0_70 = arith.constant 0 : index
      %160 = vector.load %arg4[%c0_69, %c0_70] : memref<16x384xf32, #tpu.memory_space<vmem>>, vector<16x384xf32>
      %cst_71 = arith.constant dense<0.000000e+00> : vector<24x384xf32>
      %161 = tpu.matmul %159, %160, %cst_71 {dimension_numbers = #tpu.dot_dimension_numbers<[1], [0], [0], [1], [0, 0, 1, 1], [], []>} : vector<24x16xf32>, vector<16x384xf32>, vector<24x384xf32> -> vector<24x384xf32>
      %c0_72 = arith.constant 0 : index
      %c0_73 = arith.constant 0 : index
      %162 = vector.load %arg18[%c0_72, %c0_73] : memref<24x384xf32, #tpu.memory_space<vmem>>, vector<24x384xf32>
      tpu.vector_store %arg18[%c0_72, %c0_73], %161 {strides = array<i32>} : memref<24x384xf32, #tpu.memory_space<vmem>>, vector<24x384xf32>,
    } else {
    }
    %c0_10 = arith.constant 0 : index
    %c0_11 = arith.constant 0 : index
    %15 = vector.load %arg4[%c0_10, %c0_11] : memref<16x384xf32, #tpu.memory_space<vmem>>, vector<16x384xf32>
    %c0_12 = arith.constant 0 : index
    %c0_13 = arith.constant 0 : index
    %16 = vector.load %arg6[%c0_12, %c0_13] : memref<128x384xf32, #tpu.memory_space<vmem>>, vector<128x384xf32>
    %c0_14 = arith.constant 0 : index
    %c0_15 = arith.constant 0 : index
    %17 = vector.load %arg8[%c0_14, %c0_15] : memref<1x384xf32, #tpu.memory_space<vmem>>, vector<1x384xf32>
    %c0_16 = arith.constant 0 : index
    %c0_17 = arith.constant 0 : index
    %18 = vector.load %arg9[%c0_16, %c0_17] : memref<128x128xf32, #tpu.memory_space<vmem>>, vector<128x128xf32>
    %c0_18 = arith.constant 0 : index
    %c0_19 = arith.constant 0 : index
    %19 = vector.load %arg10[%c0_18, %c0_19] : memref<1x128xf32, #tpu.memory_space<vmem>>, vector<1x128xf32>
    %c0_20 = arith.constant 0 : index
    %c0_21 = arith.constant 0 : index
    %20 = vector.load %arg11[%c0_20, %c0_21] : memref<128x128xf32, #tpu.memory_space<vmem>>, vector<128x128xf32>
    %c0_22 = arith.constant 0 : index
    %c0_23 = arith.constant 0 : index
    %21 = vector.load %arg12[%c0_22, %c0_23] : memref<1x128xf32, #tpu.memory_space<vmem>>, vector<1x128xf32>
    %c0_24 = arith.constant 0 : index
    %c0_25 = arith.constant 0 : index
    %22 = vector.load %arg13[%c0_24, %c0_25] : memref<128x16xf32, #tpu.memory_space<vmem>>, vector<128x16xf32>
    %c0_26 = arith.constant 0 : index
    %c0_27 = arith.constant 0 : index
    %23 = vector.load %arg14[%c0_26, %c0_27] : memref<1x16xf32, #tpu.memory_space<vmem>>, vector<1x16xf32>
    %c0_28 = arith.constant 0 : index
    %c0_29 = arith.constant 0 : index
    %24 = vector.load %arg16[%c0_28, %c0_29] : memref<8x128xf32, #tpu.memory_space<vmem>>, vector<8x128xf32>
    %c0_i32_30 = arith.constant 0 : i32
    %c3_i32_31 = arith.constant 3 : i32
    %25 = arith.muli %arg1, %c3_i32_31 : i32
    %26 = arith.addi %25, %c0_i32_30 : i32
    %c8_i32 = arith.constant 8 : i32
    %27 = arith.muli %c0_i32_30, %c8_i32 : i32
    %28 = tpu.assume_multiple %27, 8 : i32
    %c4_i32_32 = arith.constant 4 : i32
    %29 = arith.cmpi sle, %26, %c4_i32_32 : i32
    %30 = arith.extui %29 : i1 to i32
    %c0_i32_33 = arith.constant 0 : i32
    %31 = arith.cmpi ne, %30, %c0_i32_33 : i32
    %32 = scf.if %31 -> (vector<8x384xf32>) {
      %158 = arith.index_cast %28 : i32 to index
      %c0_66 = arith.constant 0 : index
      %159 = vector.load %arg18[%158, %c0_66] : memref<24x384xf32, #tpu.memory_space<vmem>>, vector<8x384xf32>
      scf.yield %159 : vector<8x384xf32>
    } else {
      %cst_66 = arith.constant dense<0.000000e+00> : vector<8x128xf32>
      %158 = tpu.matmul %24, %18, %cst_66 {dimension_numbers = #tpu.dot_dimension_numbers<[1], [0], [0], [1], [0, 0, 1, 1], [], []>} : vector<8x128xf32>, vector<128x128xf32>, vector<8x128xf32> -> vector<8x128xf32>
      %159 = vector.broadcast %19 : vector<1x128xf32> to vector<8x128xf32>
      %160 = arith.addf %158, %159 : vector<8x128xf32>
      %cst_67 = arith.constant 0.000000e+00 : f32
      %161 = vector.broadcast %cst_67 : f32 to vector<8x128xf32>
      %162 = arith.cmpf ogt, %160, %161 : vector<8x128xf32>
      %cst_68 = arith.constant 0.000000e+00 : f32
      %163 = vector.broadcast %cst_68 : f32 to vector<8x128xf32>
      %164 = arith.minimumf %160, %163 : vector<8x128xf32>
      %165 = math.exp %164 : vector<8x128xf32>
      %cst_69 = arith.constant 1.000000e+00 : f32
      %166 = vector.broadcast %cst_69 : f32 to vector<8x128xf32>
      %167 = arith.subf %165, %166 : vector<8x128xf32>
      %168 = arith.select %162, %160, %167 : vector<8x128xi1>, vector<8x128xf32>
      %cst_70 = arith.constant dense<0.000000e+00> : vector<8x128xf32>
      %169 = tpu.matmul %168, %20, %cst_70 {dimension_numbers = #tpu.dot_dimension_numbers<[1], [0], [0], [1], [0, 0, 1, 1], [], []>} : vector<8x128xf32>, vector<128x128xf32>, vector<8x128xf32> -> vector<8x128xf32>
      %170 = vector.broadcast %21 : vector<1x128xf32> to vector<8x128xf32>
      %171 = arith.addf %169, %170 : vector<8x128xf32>
      %cst_71 = arith.constant 0.000000e+00 : f32
      %172 = vector.broadcast %cst_71 : f32 to vector<8x128xf32>
      %173 = arith.cmpf ogt, %171, %172 : vector<8x128xf32>
      %cst_72 = arith.constant 0.000000e+00 : f32
      %174 = vector.broadcast %cst_72 : f32 to vector<8x128xf32>
      %175 = arith.minimumf %171, %174 : vector<8x128xf32>
      %176 = math.exp %175 : vector<8x128xf32>
      %cst_73 = arith.constant 1.000000e+00 : f32
      %177 = vector.broadcast %cst_73 : f32 to vector<8x128xf32>
      %178 = arith.subf %176, %177 : vector<8x128xf32>
      %179 = arith.select %173, %171, %178 : vector<8x128xi1>, vector<8x128xf32>
      %cst_74 = arith.constant dense<0.000000e+00> : vector<8x16xf32>
      %180 = tpu.matmul %179, %22, %cst_74 {dimension_numbers = #tpu.dot_dimension_numbers<[1], [0], [0], [1], [0, 0, 1, 1], [], []>} : vector<8x128xf32>, vector<128x16xf32>, vector<8x16xf32> -> vector<8x16xf32>
      %181 = vector.broadcast %23 : vector<1x16xf32> to vector<8x16xf32>
      %182 = arith.addf %180, %181 : vector<8x16xf32>
      %cst_75 = arith.constant dense<0.000000e+00> : vector<8x384xf32>
      %183 = tpu.matmul %182, %15, %cst_75 {dimension_numbers = #tpu.dot_dimension_numbers<[1], [0], [0], [1], [0, 0, 1, 1], [], []>} : vector<8x16xf32>, vector<16x384xf32>, vector<8x384xf32> -> vector<8x384xf32>
      scf.yield %183 : vector<8x384xf32>
    }
    %33 = arith.index_cast %28 : i32 to index
    %c0_34 = arith.constant 0 : index
    %34 = vector.load %arg17[%33, %c0_34] : memref<24x384xf32, #tpu.memory_space<vmem>>, vector<8x384xf32>
    %35 = arith.addf %32, %34 : vector<8x384xf32>
    %cst_35 = arith.constant dense<0.000000e+00> : vector<8x384xf32>
    %36 = tpu.matmul %24, %16, %cst_35 {dimension_numbers = #tpu.dot_dimension_numbers<[1], [0], [0], [1], [0, 0, 1, 1], [], []>} : vector<8x128xf32>, vector<128x384xf32>, vector<8x384xf32> -> vector<8x384xf32>
    %37 = vector.broadcast %17 : vector<1x384xf32> to vector<8x384xf32>
    %38 = arith.addf %36, %37 : vector<8x384xf32>
    %39 = vector.extract_strided_slice %35 {offsets = [0, 0], sizes = [8, 128], strides = [1, 1]} : vector<8x384xf32> to vector<8x128xf32>
    %40 = vector.extract_strided_slice %38 {offsets = [0, 0], sizes = [8, 128], strides = [1, 1]} : vector<8x384xf32> to vector<8x128xf32>
    %41 = arith.addf %39, %40 : vector<8x128xf32>
    %42 = arith.negf %41 : vector<8x128xf32>
    %43 = math.exp %42 : vector<8x128xf32>
    %cst_36 = arith.constant 1.000000e+00 : f32
    %44 = vector.broadcast %cst_36 : f32 to vector<8x128xf32>
    %45 = arith.addf %44, %43 : vector<8x128xf32>
    %46 = arith.divf %44, %45 : vector<8x128xf32>
    %47 = vector.extract_strided_slice %35 {offsets = [0, 128], sizes = [8, 128], strides = [1, 1]} : vector<8x384xf32> to vector<8x128xf32>
    %48 = vector.extract_strided_slice %38 {offsets = [0, 128], sizes = [8, 128], strides = [1, 1]} : vector<8x384xf32> to vector<8x128xf32>
    %49 = arith.addf %47, %48 : vector<8x128xf32>
    %50 = arith.negf %49 : vector<8x128xf32>
    %51 = math.exp %50 : vector<8x128xf32>
    %cst_37 = arith.constant 1.000000e+00 : f32
    %52 = vector.broadcast %cst_37 : f32 to vector<8x128xf32>
    %53 = arith.addf %52, %51 : vector<8x128xf32>
    %54 = arith.divf %52, %53 : vector<8x128xf32>
    %55 = vector.extract_strided_slice %35 {offsets = [0, 256], sizes = [8, 128], strides = [1, 1]} : vector<8x384xf32> to vector<8x128xf32>
    %56 = vector.extract_strided_slice %38 {offsets = [0, 256], sizes = [8, 128], strides = [1, 1]} : vector<8x384xf32> to vector<8x128xf32>
    %57 = arith.mulf %46, %56 : vector<8x128xf32>
    %58 = arith.addf %55, %57 : vector<8x128xf32>
    %59 = math.tanh %58 : vector<8x128xf32>
    %cst_38 = arith.constant 1.000000e+00 : f32
    %60 = vector.broadcast %cst_38 : f32 to vector<8x128xf32>
    %61 = arith.subf %60, %54 : vector<8x128xf32>
    %62 = arith.mulf %61, %59 : vector<8x128xf32>
    %63 = arith.mulf %54, %24 : vector<8x128xf32>
    %64 = arith.addf %62, %63 : vector<8x128xf32>
    %65 = arith.index_cast %c0_i32_30 : i32 to index
    %c0_39 = arith.constant 0 : index
    %c0_40 = arith.constant 0 : index
    %66 = vector.load %arg15[%65, %c0_39, %c0_40] : memref<3x8x128xf32, #tpu.memory_space<vmem>>, vector<1x8x128xf32>
    %67 = vector.shape_cast %66 : vector<1x8x128xf32> to vector<8x128xf32>
    %68 = vector.shape_cast %64 : vector<8x128xf32> to vector<1x8x128xf32>
    tpu.vector_store %arg15[%65, %c0_39, %c0_40], %68 {strides = array<i32>} : memref<3x8x128xf32, #tpu.memory_space<vmem>>, vector<1x8x128xf32>,
    %c1_i32 = arith.constant 1 : i32
    %c3_i32_41 = arith.constant 3 : i32
    %69 = arith.muli %arg1, %c3_i32_41 : i32
    %70 = arith.addi %69, %c1_i32 : i32
    %c8_i32_42 = arith.constant 8 : i32
    %71 = arith.muli %c1_i32, %c8_i32_42 : i32
    %72 = tpu.assume_multiple %71, 8 : i32
    %c4_i32_43 = arith.constant 4 : i32
    %73 = arith.cmpi sle, %70, %c4_i32_43 : i32
    %74 = arith.extui %73 : i1 to i32
    %c0_i32_44 = arith.constant 0 : i32
    %75 = arith.cmpi ne, %74, %c0_i32_44 : i32
    %76 = scf.if %75 -> (vector<8x384xf32>) {
      %158 = arith.index_cast %72 : i32 to index
      %c0_66 = arith.constant 0 : index
      %159 = vector.load %arg18[%158, %c0_66] : memref<24x384xf32, #tpu.memory_space<vmem>>, vector<8x384xf32>
      scf.yield %159 : vector<8x384xf32>
    } else {
      %cst_66 = arith.constant dense<0.000000e+00> : vector<8x128xf32>
      %158 = tpu.matmul %64, %18, %cst_66 {dimension_numbers = #tpu.dot_dimension_numbers<[1], [0], [0], [1], [0, 0, 1, 1], [], []>} : vector<8x128xf32>, vector<128x128xf32>, vector<8x128xf32> -> vector<8x128xf32>
      %159 = vector.broadcast %19 : vector<1x128xf32> to vector<8x128xf32>
      %160 = arith.addf %158, %159 : vector<8x128xf32>
      %cst_67 = arith.constant 0.000000e+00 : f32
      %161 = vector.broadcast %cst_67 : f32 to vector<8x128xf32>
      %162 = arith.cmpf ogt, %160, %161 : vector<8x128xf32>
      %cst_68 = arith.constant 0.000000e+00 : f32
      %163 = vector.broadcast %cst_68 : f32 to vector<8x128xf32>
      %164 = arith.minimumf %160, %163 : vector<8x128xf32>
      %165 = math.exp %164 : vector<8x128xf32>
      %cst_69 = arith.constant 1.000000e+00 : f32
      %166 = vector.broadcast %cst_69 : f32 to vector<8x128xf32>
      %167 = arith.subf %165, %166 : vector<8x128xf32>
      %168 = arith.select %162, %160, %167 : vector<8x128xi1>, vector<8x128xf32>
      %cst_70 = arith.constant dense<0.000000e+00> : vector<8x128xf32>
      %169 = tpu.matmul %168, %20, %cst_70 {dimension_numbers = #tpu.dot_dimension_numbers<[1], [0], [0], [1], [0, 0, 1, 1], [], []>} : vector<8x128xf32>, vector<128x128xf32>, vector<8x128xf32> -> vector<8x128xf32>
      %170 = vector.broadcast %21 : vector<1x128xf32> to vector<8x128xf32>
      %171 = arith.addf %169, %170 : vector<8x128xf32>
      %cst_71 = arith.constant 0.000000e+00 : f32
      %172 = vector.broadcast %cst_71 : f32 to vector<8x128xf32>
      %173 = arith.cmpf ogt, %171, %172 : vector<8x128xf32>
      %cst_72 = arith.constant 0.000000e+00 : f32
      %174 = vector.broadcast %cst_72 : f32 to vector<8x128xf32>
      %175 = arith.minimumf %171, %174 : vector<8x128xf32>
      %176 = math.exp %175 : vector<8x128xf32>
      %cst_73 = arith.constant 1.000000e+00 : f32
      %177 = vector.broadcast %cst_73 : f32 to vector<8x128xf32>
      %178 = arith.subf %176, %177 : vector<8x128xf32>
      %179 = arith.select %173, %171, %178 : vector<8x128xi1>, vector<8x128xf32>
      %cst_74 = arith.constant dense<0.000000e+00> : vector<8x16xf32>
      %180 = tpu.matmul %179, %22, %cst_74 {dimension_numbers = #tpu.dot_dimension_numbers<[1], [0], [0], [1], [0, 0, 1, 1], [], []>} : vector<8x128xf32>, vector<128x16xf32>, vector<8x16xf32> -> vector<8x16xf32>
      %181 = vector.broadcast %23 : vector<1x16xf32> to vector<8x16xf32>
      %182 = arith.addf %180, %181 : vector<8x16xf32>
      %cst_75 = arith.constant dense<0.000000e+00> : vector<8x384xf32>
      %183 = tpu.matmul %182, %15, %cst_75 {dimension_numbers = #tpu.dot_dimension_numbers<[1], [0], [0], [1], [0, 0, 1, 1], [], []>} : vector<8x16xf32>, vector<16x384xf32>, vector<8x384xf32> -> vector<8x384xf32>
      scf.yield %183 : vector<8x384xf32>
    }
    %77 = arith.index_cast %72 : i32 to index
    %c0_45 = arith.constant 0 : index
    %78 = vector.load %arg17[%77, %c0_45] : memref<24x384xf32, #tpu.memory_space<vmem>>, vector<8x384xf32>
    %79 = arith.addf %76, %78 : vector<8x384xf32>
    %cst_46 = arith.constant dense<0.000000e+00> : vector<8x384xf32>
    %80 = tpu.matmul %64, %16, %cst_46 {dimension_numbers = #tpu.dot_dimension_numbers<[1], [0], [0], [1], [0, 0, 1, 1], [], []>} : vector<8x128xf32>, vector<128x384xf32>, vector<8x384xf32> -> vector<8x384xf32>
    %81 = vector.broadcast %17 : vector<1x384xf32> to vector<8x384xf32>
    %82 = arith.addf %80, %81 : vector<8x384xf32>
    %83 = vector.extract_strided_slice %79 {offsets = [0, 0], sizes = [8, 128], strides = [1, 1]} : vector<8x384xf32> to vector<8x128xf32>
    %84 = vector.extract_strided_slice %82 {offsets = [0, 0], sizes = [8, 128], strides = [1, 1]} : vector<8x384xf32> to vector<8x128xf32>
    %85 = arith.addf %83, %84 : vector<8x128xf32>
    %86 = arith.negf %85 : vector<8x128xf32>
    %87 = math.exp %86 : vector<8x128xf32>
    %cst_47 = arith.constant 1.000000e+00 : f32
    %88 = vector.broadcast %cst_47 : f32 to vector<8x128xf32>
    %89 = arith.addf %88, %87 : vector<8x128xf32>
    %90 = arith.divf %88, %89 : vector<8x128xf32>
    %91 = vector.extract_strided_slice %79 {offsets = [0, 128], sizes = [8, 128], strides = [1, 1]} : vector<8x384xf32> to vector<8x128xf32>
    %92 = vector.extract_strided_slice %82 {offsets = [0, 128], sizes = [8, 128], strides = [1, 1]} : vector<8x384xf32> to vector<8x128xf32>
    %93 = arith.addf %91, %92 : vector<8x128xf32>
    %94 = arith.negf %93 : vector<8x128xf32>
    %95 = math.exp %94 : vector<8x128xf32>
    %cst_48 = arith.constant 1.000000e+00 : f32
    %96 = vector.broadcast %cst_48 : f32 to vector<8x128xf32>
    %97 = arith.addf %96, %95 : vector<8x128xf32>
    %98 = arith.divf %96, %97 : vector<8x128xf32>
    %99 = vector.extract_strided_slice %79 {offsets = [0, 256], sizes = [8, 128], strides = [1, 1]} : vector<8x384xf32> to vector<8x128xf32>
    %100 = vector.extract_strided_slice %82 {offsets = [0, 256], sizes = [8, 128], strides = [1, 1]} : vector<8x384xf32> to vector<8x128xf32>
    %101 = arith.mulf %90, %100 : vector<8x128xf32>
    %102 = arith.addf %99, %101 : vector<8x128xf32>
    %103 = math.tanh %102 : vector<8x128xf32>
    %cst_49 = arith.constant 1.000000e+00 : f32
    %104 = vector.broadcast %cst_49 : f32 to vector<8x128xf32>
    %105 = arith.subf %104, %98 : vector<8x128xf32>
    %106 = arith.mulf %105, %103 : vector<8x128xf32>
    %107 = arith.mulf %98, %64 : vector<8x128xf32>
    %108 = arith.addf %106, %107 : vector<8x128xf32>
    %109 = arith.index_cast %c1_i32 : i32 to index
    %c0_50 = arith.constant 0 : index
    %c0_51 = arith.constant 0 : index
    %110 = vector.load %arg15[%109, %c0_50, %c0_51] : memref<3x8x128xf32, #tpu.memory_space<vmem>>, vector<1x8x128xf32>
    %111 = vector.shape_cast %110 : vector<1x8x128xf32> to vector<8x128xf32>
    %112 = vector.shape_cast %108 : vector<8x128xf32> to vector<1x8x128xf32>
    tpu.vector_store %arg15[%109, %c0_50, %c0_51], %112 {strides = array<i32>} : memref<3x8x128xf32, #tpu.memory_space<vmem>>, vector<1x8x128xf32>,
    %c2_i32 = arith.constant 2 : i32
    %c3_i32_52 = arith.constant 3 : i32
    %113 = arith.muli %arg1, %c3_i32_52 : i32
    %114 = arith.addi %113, %c2_i32 : i32
    %c8_i32_53 = arith.constant 8 : i32
    %115 = arith.muli %c2_i32, %c8_i32_53 : i32
    %116 = tpu.assume_multiple %115, 8 : i32
    %c4_i32_54 = arith.constant 4 : i32
    %117 = arith.cmpi sle, %114, %c4_i32_54 : i32
    %118 = arith.extui %117 : i1 to i32
    %c0_i32_55 = arith.constant 0 : i32
    %119 = arith.cmpi ne, %118, %c0_i32_55 : i32
    %120 = scf.if %119 -> (vector<8x384xf32>) {
      %158 = arith.index_cast %116 : i32 to index
      %c0_66 = arith.constant 0 : index
      %159 = vector.load %arg18[%158, %c0_66] : memref<24x384xf32, #tpu.memory_space<vmem>>, vector<8x384xf32>
      scf.yield %159 : vector<8x384xf32>
    } else {
      %cst_66 = arith.constant dense<0.000000e+00> : vector<8x128xf32>
      %158 = tpu.matmul %108, %18, %cst_66 {dimension_numbers = #tpu.dot_dimension_numbers<[1], [0], [0], [1], [0, 0, 1, 1], [], []>} : vector<8x128xf32>, vector<128x128xf32>, vector<8x128xf32> -> vector<8x128xf32>
      %159 = vector.broadcast %19 : vector<1x128xf32> to vector<8x128xf32>
      %160 = arith.addf %158, %159 : vector<8x128xf32>
      %cst_67 = arith.constant 0.000000e+00 : f32
      %161 = vector.broadcast %cst_67 : f32 to vector<8x128xf32>
      %162 = arith.cmpf ogt, %160, %161 : vector<8x128xf32>
      %cst_68 = arith.constant 0.000000e+00 : f32
      %163 = vector.broadcast %cst_68 : f32 to vector<8x128xf32>
      %164 = arith.minimumf %160, %163 : vector<8x128xf32>
      %165 = math.exp %164 : vector<8x128xf32>
      %cst_69 = arith.constant 1.000000e+00 : f32
      %166 = vector.broadcast %cst_69 : f32 to vector<8x128xf32>
      %167 = arith.subf %165, %166 : vector<8x128xf32>
      %168 = arith.select %162, %160, %167 : vector<8x128xi1>, vector<8x128xf32>
      %cst_70 = arith.constant dense<0.000000e+00> : vector<8x128xf32>
      %169 = tpu.matmul %168, %20, %cst_70 {dimension_numbers = #tpu.dot_dimension_numbers<[1], [0], [0], [1], [0, 0, 1, 1], [], []>} : vector<8x128xf32>, vector<128x128xf32>, vector<8x128xf32> -> vector<8x128xf32>
      %170 = vector.broadcast %21 : vector<1x128xf32> to vector<8x128xf32>
      %171 = arith.addf %169, %170 : vector<8x128xf32>
      %cst_71 = arith.constant 0.000000e+00 : f32
      %172 = vector.broadcast %cst_71 : f32 to vector<8x128xf32>
      %173 = arith.cmpf ogt, %171, %172 : vector<8x128xf32>
      %cst_72 = arith.constant 0.000000e+00 : f32
      %174 = vector.broadcast %cst_72 : f32 to vector<8x128xf32>
      %175 = arith.minimumf %171, %174 : vector<8x128xf32>
      %176 = math.exp %175 : vector<8x128xf32>
      %cst_73 = arith.constant 1.000000e+00 : f32
      %177 = vector.broadcast %cst_73 : f32 to vector<8x128xf32>
      %178 = arith.subf %176, %177 : vector<8x128xf32>
      %179 = arith.select %173, %171, %178 : vector<8x128xi1>, vector<8x128xf32>
      %cst_74 = arith.constant dense<0.000000e+00> : vector<8x16xf32>
      %180 = tpu.matmul %179, %22, %cst_74 {dimension_numbers = #tpu.dot_dimension_numbers<[1], [0], [0], [1], [0, 0, 1, 1], [], []>} : vector<8x128xf32>, vector<128x16xf32>, vector<8x16xf32> -> vector<8x16xf32>
      %181 = vector.broadcast %23 : vector<1x16xf32> to vector<8x16xf32>
      %182 = arith.addf %180, %181 : vector<8x16xf32>
      %cst_75 = arith.constant dense<0.000000e+00> : vector<8x384xf32>
      %183 = tpu.matmul %182, %15, %cst_75 {dimension_numbers = #tpu.dot_dimension_numbers<[1], [0], [0], [1], [0, 0, 1, 1], [], []>} : vector<8x16xf32>, vector<16x384xf32>, vector<8x384xf32> -> vector<8x384xf32>
      scf.yield %183 : vector<8x384xf32>
    }
    %121 = arith.index_cast %116 : i32 to index
    %c0_56 = arith.constant 0 : index
    %122 = vector.load %arg17[%121, %c0_56] : memref<24x384xf32, #tpu.memory_space<vmem>>, vector<8x384xf32>
    %123 = arith.addf %120, %122 : vector<8x384xf32>
    %cst_57 = arith.constant dense<0.000000e+00> : vector<8x384xf32>
    %124 = tpu.matmul %108, %16, %cst_57 {dimension_numbers = #tpu.dot_dimension_numbers<[1], [0], [0], [1], [0, 0, 1, 1], [], []>} : vector<8x128xf32>, vector<128x384xf32>, vector<8x384xf32> -> vector<8x384xf32>
    %125 = vector.broadcast %17 : vector<1x384xf32> to vector<8x384xf32>
    %126 = arith.addf %124, %125 : vector<8x384xf32>
    %127 = vector.extract_strided_slice %123 {offsets = [0, 0], sizes = [8, 128], strides = [1, 1]} : vector<8x384xf32> to vector<8x128xf32>
    %128 = vector.extract_strided_slice %126 {offsets = [0, 0], sizes = [8, 128], strides = [1, 1]} : vector<8x384xf32> to vector<8x128xf32>
    %129 = arith.addf %127, %128 : vector<8x128xf32>
    %130 = arith.negf %129 : vector<8x128xf32>
    %131 = math.exp %130 : vector<8x128xf32>
    %cst_58 = arith.constant 1.000000e+00 : f32
    %132 = vector.broadcast %cst_58 : f32 to vector<8x128xf32>
    %133 = arith.addf %132, %131 : vector<8x128xf32>
    %134 = arith.divf %132, %133 : vector<8x128xf32>
    %135 = vector.extract_strided_slice %123 {offsets = [0, 128], sizes = [8, 128], strides = [1, 1]} : vector<8x384xf32> to vector<8x128xf32>
    %136 = vector.extract_strided_slice %126 {offsets = [0, 128], sizes = [8, 128], strides = [1, 1]} : vector<8x384xf32> to vector<8x128xf32>
    %137 = arith.addf %135, %136 : vector<8x128xf32>
    %138 = arith.negf %137 : vector<8x128xf32>
    %139 = math.exp %138 : vector<8x128xf32>
    %cst_59 = arith.constant 1.000000e+00 : f32
    %140 = vector.broadcast %cst_59 : f32 to vector<8x128xf32>
    %141 = arith.addf %140, %139 : vector<8x128xf32>
    %142 = arith.divf %140, %141 : vector<8x128xf32>
    %143 = vector.extract_strided_slice %123 {offsets = [0, 256], sizes = [8, 128], strides = [1, 1]} : vector<8x384xf32> to vector<8x128xf32>
    %144 = vector.extract_strided_slice %126 {offsets = [0, 256], sizes = [8, 128], strides = [1, 1]} : vector<8x384xf32> to vector<8x128xf32>
    %145 = arith.mulf %134, %144 : vector<8x128xf32>
    %146 = arith.addf %143, %145 : vector<8x128xf32>
    %147 = math.tanh %146 : vector<8x128xf32>
    %cst_60 = arith.constant 1.000000e+00 : f32
    %148 = vector.broadcast %cst_60 : f32 to vector<8x128xf32>
    %149 = arith.subf %148, %142 : vector<8x128xf32>
    %150 = arith.mulf %149, %147 : vector<8x128xf32>
    %151 = arith.mulf %142, %108 : vector<8x128xf32>
    %152 = arith.addf %150, %151 : vector<8x128xf32>
    %153 = arith.index_cast %c2_i32 : i32 to index
    %c0_61 = arith.constant 0 : index
    %c0_62 = arith.constant 0 : index
    %154 = vector.load %arg15[%153, %c0_61, %c0_62] : memref<3x8x128xf32, #tpu.memory_space<vmem>>, vector<1x8x128xf32>
    %155 = vector.shape_cast %154 : vector<1x8x128xf32> to vector<8x128xf32>
    %156 = vector.shape_cast %152 : vector<8x128xf32> to vector<1x8x128xf32>
    tpu.vector_store %arg15[%153, %c0_61, %c0_62], %156 {strides = array<i32>} : memref<3x8x128xf32, #tpu.memory_space<vmem>>, vector<1x8x128xf32>,
    %c3_i32_63 = arith.constant 3 : i32
    %c0_64 = arith.constant 0 : index
    %c0_65 = arith.constant 0 : index
    %157 = vector.load %arg16[%c0_64, %c0_65] : memref<8x128xf32, #tpu.memory_space<vmem>>, vector<8x128xf32>
    tpu.vector_store %arg16[%c0_64, %c0_65], %152 {strides = array<i32>} : memref<8x128xf32, #tpu.memory_space<vmem>>, vector<8x128xf32>,
    return
  }
  func.func @transform_0(%arg0: i32, %arg1: i32) -> (i32, i32, i32) {
    %c0_i32 = arith.constant 0 : i32
    %c0_i32_0 = arith.constant 0 : i32
    return %arg1, %arg0, %c0_i32 : i32, i32, i32
  }
  func.func @transform_1(%arg0: i32, %arg1: i32) -> (i32, i32, i32) {
    %c0_i32 = arith.constant 0 : i32
    %c0_i32_0 = arith.constant 0 : i32
    return %arg1, %arg0, %c0_i32 : i32, i32, i32
  }
  func.func @transform_2(%arg0: i32, %arg1: i32) -> (i32, i32) {
    %c0_i32 = arith.constant 0 : i32
    %c0_i32_0 = arith.constant 0 : i32
    %c0_i32_1 = arith.constant 0 : i32
    return %c0_i32, %c0_i32_0 : i32, i32
  }
  func.func @transform_3(%arg0: i32, %arg1: i32) -> (i32, i32) {
    %c0_i32 = arith.constant 0 : i32
    %c0_i32_0 = arith.constant 0 : i32
    %c0_i32_1 = arith.constant 0 : i32
    return %c0_i32, %c0_i32_0 : i32, i32
  }
  func.func @transform_4(%arg0: i32, %arg1: i32) -> (i32, i32) {
    %c0_i32 = arith.constant 0 : i32
    %c0_i32_0 = arith.constant 0 : i32
    %c0_i32_1 = arith.constant 0 : i32
    return %c0_i32, %c0_i32_0 : i32, i32
  }
  func.func @transform_5(%arg0: i32, %arg1: i32) -> (i32, i32) {
    %c0_i32 = arith.constant 0 : i32
    %c0_i32_0 = arith.constant 0 : i32
    %c0_i32_1 = arith.constant 0 : i32
    return %c0_i32, %c0_i32_0 : i32, i32
  }
  func.func @transform_6(%arg0: i32, %arg1: i32) -> (i32, i32) {
    %c0_i32 = arith.constant 0 : i32
    %c0_i32_0 = arith.constant 0 : i32
    %c0_i32_1 = arith.constant 0 : i32
    return %c0_i32, %c0_i32_0 : i32, i32
  }
  func.func @transform_7(%arg0: i32, %arg1: i32) -> (i32, i32) {
    %c0_i32 = arith.constant 0 : i32
    %c0_i32_0 = arith.constant 0 : i32
    %c0_i32_1 = arith.constant 0 : i32
    return %c0_i32, %c0_i32_0 : i32, i32
  }
  func.func @transform_8(%arg0: i32, %arg1: i32) -> (i32, i32) {
    %c0_i32 = arith.constant 0 : i32
    %c0_i32_0 = arith.constant 0 : i32
    %c0_i32_1 = arith.constant 0 : i32
    return %c0_i32, %c0_i32_0 : i32, i32
  }
  func.func @transform_9(%arg0: i32, %arg1: i32) -> (i32, i32) {
    %c0_i32 = arith.constant 0 : i32
    %c0_i32_0 = arith.constant 0 : i32
    %c0_i32_1 = arith.constant 0 : i32
    return %c0_i32, %c0_i32_0 : i32, i32
  }
  func.func @transform_10(%arg0: i32, %arg1: i32) -> (i32, i32) {
    %c0_i32 = arith.constant 0 : i32
    %c0_i32_0 = arith.constant 0 : i32
    %c0_i32_1 = arith.constant 0 : i32
    return %c0_i32, %c0_i32_0 : i32, i32
  }
  func.func @transform_11(%arg0: i32, %arg1: i32) -> (i32, i32) {
    %c0_i32 = arith.constant 0 : i32
    %c0_i32_0 = arith.constant 0 : i32
    %c0_i32_1 = arith.constant 0 : i32
    return %c0_i32, %c0_i32_0 : i32, i32
  }
  func.func @transform_12(%arg0: i32, %arg1: i32) -> (i32, i32) {
    %c0_i32 = arith.constant 0 : i32
    %c0_i32_0 = arith.constant 0 : i32
    %c0_i32_1 = arith.constant 0 : i32
    return %c0_i32, %c0_i32_0 : i32, i32
  }
  func.func @transform_13(%arg0: i32, %arg1: i32) -> (i32, i32, i32) {
    %c0_i32 = arith.constant 0 : i32
    %c0_i32_0 = arith.constant 0 : i32
    return %arg1, %arg0, %c0_i32 : i32, i32, i32
  }
}

</mosaic_0001>

<llo_original>
// kernel: tpu_custom_call.1
$region0: #{tpu_custom_call.1}
  #allocation0 [shape = 'u32[]', space=smem, size = 0x4, offset = 0x4, fixed_abs, tag = 'smem constant byte address 0x4 - core index']
  #allocation1 [shape = 'u32[72,128]{1,0:T(1,128)}', space=vmem, size = 0x9000, scoped, tag = 'internal scratch']
  #allocation2 [shape = 'f32[8,128]{1,0:T(8,128)}', space=vmem, size = 0x1000, scoped, tag = 'scratch operand']
  #allocation3 [shape = 'f32[24,384]{1,0:T(8,128)}', space=vmem, size = 0x9000, scoped, tag = 'scratch operand']
  #allocation4 [shape = 'f32[24,384]{1,0:T(8,128)}', space=vmem, size = 0x9000, scoped, tag = 'scratch operand']
  %s0 = inlined_call_operand.vmem [shape: f32[9,16,16], index: 0, kind: input, shape index: {}]
  %s1 = inlined_call_operand.vmem [shape: f32[9,16,4], index: 1, kind: input, shape index: {}]
  %s2 = inlined_call_operand.hbm [shape: f32[16,384], index: 2, kind: input, shape index: {}]
  %s3 = inlined_call_operand.vmem [shape: f32[4,384], index: 3, kind: input, shape index: {}]
  %s4 = inlined_call_operand.hbm [shape: f32[128,384], index: 4, kind: input, shape index: {}]
  %s5 = inlined_call_operand.vmem [shape: f32[1,384], index: 5, kind: input, shape index: {}]
  %s6 = inlined_call_operand.vmem [shape: f32[1,384], index: 6, kind: input, shape index: {}]
  %s7 = inlined_call_operand.vmem [shape: f32[128,128], index: 7, kind: input, shape index: {}]
  %s8 = inlined_call_operand.vmem [shape: f32[1,128], index: 8, kind: input, shape index: {}]
  %s9 = inlined_call_operand.hbm [shape: f32[128,128], index: 9, kind: input, shape index: {}]
  %s10 = inlined_call_operand.vmem [shape: f32[1,128], index: 10, kind: input, shape index: {}]
  %s11 = inlined_call_operand.vmem [shape: f32[128,16], index: 11, kind: input, shape index: {}]
  %s12 = inlined_call_operand.vmem [shape: f32[1,16], index: 12, kind: input, shape index: {}]
  %s13 = inlined_call_operand.hbm [shape: f32[9,16,128], index: 13, kind: output, shape index: {}]
  %s14 = sld [smem:[#allocation0]]
  $region205: #{tpu_custom_call.1} parent=0
    _
  %s16 = ssub.s32 1, %s14
  %s17 = scalar_select 0, %s16, %s14
  $region1: #{tpu_custom_call.1} parent=0
    #allocation5 [shape = 'u8[24576]{0}', space=vmem, size = 0x6000, scoped, tag = 'input window, operand 0']
    #allocation6 [shape = 'u8[24576]{0}', space=vmem, size = 0x6000, scoped, tag = 'input window, operand 1']
    #allocation7 [shape = 'u8[24576]{0}', space=vmem, size = 0x6000, scoped, tag = 'input window, operand 2, single buffered']
    #allocation8 [shape = 's32[2]{0}', space=sflag, size = 0x8, scoped, tag = 'scoped memory for tpu_custom_call.1']
    #allocation9 [shape = 's32[2]{0}', space=sflag, size = 0x8, scoped, tag = 'scoped memory for tpu_custom_call.1']
    #allocation10 [shape = 'u8[196608]{0}', space=vmem, size = 0x30000, scoped, tag = 'input window, operand 4, single buffered']
    #allocation11 [shape = 's32[1]{0}', space=sflag, size = 0x4, scoped, tag = 'scoped memory for tpu_custom_call.1']
    #allocation12 [shape = 'u8[65536]{0}', space=vmem, size = 0x10000, scoped, tag = 'input window, operand 9, single buffered']
    #allocation13 [shape = 'u8[24576]{0}', space=vmem, size = 0x6000, scoped, tag = 'output window, operand 0']
    %18 = vsyncpa [#allocation8], 0
    %19 = vsyncpa [#allocation11], 0
    %20 = vsyncpa [#allocation9], 0
    %s21 = scalar_lea.sflag [#allocation9], 1
    %22 = vsyncpa %s21, 0
    loop: start=0, step=1, limit=8
    $region2: #{tpu_custom_call.1} parent=1 // loop_pre_header
      _
    $region3: #{tpu_custom_call.1} parent=1 // loop_header
      %s24 = sphi 0, %s28
      %p25 = scmp.ge.s32.totalorder %s24, 8
      %s31 = sphi 0, %s43
      %s32 = sphi 0, %s39
      %s33 = sphi 0, %s31
      %s34 = sphi 0, %s32
      %s35 = sphi 0, %s33
      %s36 = sphi 0, %s34
      %s48 = sphi 0, %s50
      %s51 = sphi 0, %s48
      %s52 = sphi 0, %s51
      %s68 = sphi 0, %s52
      %s76 = sphi 0, %s78
      %s79 = sphi 0, %s76
      %s80 = sphi 0, %s79
      %s96 = sphi 0, %s80
      %s100 = sphi 0, %s100
      %s102 = sphi 0, %s100
      %s103 = sphi 0, %s102
      %s117 = sphi 0, %s103
      %s121 = sphi 0, %s121
      %s123 = sphi 0, %s121
      %s124 = sphi 0, %s123
      %s138 = sphi 0, %s124
      %s142 = sphi 0, %s142
      %s144 = sphi 0, %s142
      %s145 = sphi 0, %s144
      %s159 = sphi 0, %s145
      %s163 = sphi 0, %s163
      %s165 = sphi 0, %s163
      %s166 = sphi 0, %s165
      %s180 = sphi 0, %s166
      %s184 = sphi 0, %s184
      %s186 = sphi 0, %s184
      %s187 = sphi 0, %s186
      %s201 = sphi 0, %s187
      %s205 = sphi 0, %s205
      %s207 = sphi 0, %s205
      %s208 = sphi 0, %s207
      %s222 = sphi 0, %s208
      %s226 = sphi 0, %s226
      %s228 = sphi 0, %s226
      %s229 = sphi 0, %s228
      %s243 = sphi 0, %s229
      %s247 = sphi 0, %s247
      %s249 = sphi 0, %s247
      %s250 = sphi 0, %s249
      %s264 = sphi 0, %s250
      %s268 = sphi 0, %s268
      %s270 = sphi 0, %s268
      %s271 = sphi 0, %s270
      %s285 = sphi 0, %s271
      %s289 = sphi 0, %s289
      %s291 = sphi 0, %s289
      %s292 = sphi 0, %s291
      %s306 = sphi 0, %s292
      %s310 = sphi 0, %s310
      %s312 = sphi 0, %s310
      %s313 = sphi 0, %s312
      %s327 = sphi 0, %s313
      %s335 = sphi 0, %s337
      %s338 = sphi 0, %s335
      %s339 = sphi 0, %s338
      %s355 = sphi 0, %s339
    $region4: #{tpu_custom_call.1} parent=1 // loop_header_branch
      %27 = sbr.rel (%p25) target = $region8
    $region5: #{tpu_custom_call.1} parent=1 // loop_body
      %s29 = ssub.s32 %s24, 1
      %s30 = ssub.s32 %s24, 2
      %s37 = sadd.s32 1, %s32
      %p38 = scmp.ge.s32.totalorder %s37, 3
      %s39 = scalar_select %p38, 0, %s37
      %s40 = sadd.s32 1, %s31
      %s41 = scalar_select %p38, %s40, %s31
      %p42 = scmp.ge.s32.totalorder %s41, 2
      %s43 = scalar_select %p42, 0, %s41
      %s44 = ssub.s32 %s32, %s39
      %s45 = ssub.s32 %s31, %s43
      %s46 = sor.u32 %s44, %s45
      %p47 = scmp.eq.s32.totalorder %s46, 0
      %s49 = sadd.s32 %s48, 1
      %s50 = scalar_select %p47, %s48, %s49
      %p53 = pneg %p47
      %p54 = scmp.eq.s32.totalorder %s24, 5
      %p55 = por %p53, %p54
      %p56 = scmp.ne.s32.totalorder %s48, %s51
      %p57 = scmp.eq.s32.totalorder %s24, 0
      %p58 = por %p56, %p57
      %p59 = scmp.ne.s32.totalorder %s48, %s51
      %p60 = scmp.eq.s32.totalorder %s29, 5
      %p61 = por %p59, %p60
      %p62 = scmp.ne.s32.totalorder %s51, %s52
      %p63 = scmp.eq.s32.totalorder %s29, 0
      %p64 = por %p62, %p63
      %p65 = scmp.ne.s32.totalorder %s51, %s52
      %p66 = scmp.eq.s32.totalorder %s30, 5
      %p67 = por %p65, %p66
      %p69 = scmp.ne.s32.totalorder %s52, %s68
      %p70 = scmp.eq.s32.totalorder %s30, 0
      %p71 = por %p69, %p70
      %s72 = ssub.s32 %s32, %s39
      %s73 = ssub.s32 %s31, %s43
      %s74 = sor.u32 %s72, %s73
      %p75 = scmp.eq.s32.totalorder %s74, 0
      %s77 = sadd.s32 %s76, 1
      %s78 = scalar_select %p75, %s76, %s77
      %p81 = pneg %p75
      %p82 = scmp.eq.s32.totalorder %s24, 5
      %p83 = por %p81, %p82
      %p84 = scmp.ne.s32.totalorder %s76, %s79
      %p85 = scmp.eq.s32.totalorder %s24, 0
      %p86 = por %p84, %p85
      %p87 = scmp.ne.s32.totalorder %s76, %s79
      %p88 = scmp.eq.s32.totalorder %s29, 5
      %p89 = por %p87, %p88
      %p90 = scmp.ne.s32.totalorder %s79, %s80
      %p91 = scmp.eq.s32.totalorder %s29, 0
      %p92 = por %p90, %p91
      %p93 = scmp.ne.s32.totalorder %s79, %s80
      %p94 = scmp.eq.s32.totalorder %s30, 5
      %p95 = por %p93, %p94
      %p97 = scmp.ne.s32.totalorder %s80, %s96
      %p98 = scmp.eq.s32.totalorder %s30, 0
      %p99 = por %p97, %p98
      %s101 = sadd.s32 %s100, 1
      %p104 = scmp.eq.s32.totalorder %s24, 5
      %p105 = scmp.ne.s32.totalorder %s100, %s102
      %p106 = scmp.eq.s32.totalorder %s24, 0
      %p107 = por %p105, %p106
      %p108 = scmp.ne.s32.totalorder %s100, %s102
      %p109 = scmp.eq.s32.totalorder %s29, 5
      %p110 = por %p108, %p109
      %p111 = scmp.ne.s32.totalorder %s102, %s103
      %p112 = scmp.eq.s32.totalorder %s29, 0
      %p113 = por %p111, %p112
      %p114 = scmp.ne.s32.totalorder %s102, %s103
      %p115 = scmp.eq.s32.totalorder %s30, 5
      %p116 = por %p114, %p115
      %p118 = scmp.ne.s32.totalorder %s103, %s117
      %p119 = scmp.eq.s32.totalorder %s30, 0
      %p120 = por %p118, %p119
      %s122 = sadd.s32 %s121, 1
      %p125 = scmp.eq.s32.totalorder %s24, 5
      %p126 = scmp.ne.s32.totalorder %s121, %s123
      %p127 = scmp.eq.s32.totalorder %s24, 0
      %p128 = por %p126, %p127
      %p129 = scmp.ne.s32.totalorder %s121, %s123
      %p130 = scmp.eq.s32.totalorder %s29, 5
      %p131 = por %p129, %p130
      %p132 = scmp.ne.s32.totalorder %s123, %s124
      %p133 = scmp.eq.s32.totalorder %s29, 0
      %p134 = por %p132, %p133
      %p135 = scmp.ne.s32.totalorder %s123, %s124
      %p136 = scmp.eq.s32.totalorder %s30, 5
      %p137 = por %p135, %p136
      %p139 = scmp.ne.s32.totalorder %s124, %s138
      %p140 = scmp.eq.s32.totalorder %s30, 0
      %p141 = por %p139, %p140
      %s143 = sadd.s32 %s142, 1
      %p146 = scmp.eq.s32.totalorder %s24, 5
      %p147 = scmp.ne.s32.totalorder %s142, %s144
      %p148 = scmp.eq.s32.totalorder %s24, 0
      %p149 = por %p147, %p148
      %p150 = scmp.ne.s32.totalorder %s142, %s144
      %p151 = scmp.eq.s32.totalorder %s29, 5
      %p152 = por %p150, %p151
      %p153 = scmp.ne.s32.totalorder %s144, %s145
      %p154 = scmp.eq.s32.totalorder %s29, 0
      %p155 = por %p153, %p154
      %p156 = scmp.ne.s32.totalorder %s144, %s145
      %p157 = scmp.eq.s32.totalorder %s30, 5
      %p158 = por %p156, %p157
      %p160 = scmp.ne.s32.totalorder %s145, %s159
      %p161 = scmp.eq.s32.totalorder %s30, 0
      %p162 = por %p160, %p161
      %s164 = sadd.s32 %s163, 1
      %p167 = scmp.eq.s32.totalorder %s24, 5
      %p168 = scmp.ne.s32.totalorder %s163, %s165
      %p169 = scmp.eq.s32.totalorder %s24, 0
      %p170 = por %p168, %p169
      %p171 = scmp.ne.s32.totalorder %s163, %s165
      %p172 = scmp.eq.s32.totalorder %s29, 5
      %p173 = por %p171, %p172
      %p174 = scmp.ne.s32.totalorder %s165, %s166
      %p175 = scmp.eq.s32.totalorder %s29, 0
      %p176 = por %p174, %p175
      %p177 = scmp.ne.s32.totalorder %s165, %s166
      %p178 = scmp.eq.s32.totalorder %s30, 5
      %p179 = por %p177, %p178
      %p181 = scmp.ne.s32.totalorder %s166, %s180
      %p182 = scmp.eq.s32.totalorder %s30, 0
      %p183 = por %p181, %p182
      %s185 = sadd.s32 %s184, 1
      %p188 = scmp.eq.s32.totalorder %s24, 5
      %p189 = scmp.ne.s32.totalorder %s184, %s186
      %p190 = scmp.eq.s32.totalorder %s24, 0
      %p191 = por %p189, %p190
      %p192 = scmp.ne.s32.totalorder %s184, %s186
      %p193 = scmp.eq.s32.totalorder %s29, 5
      %p194 = por %p192, %p193
      %p195 = scmp.ne.s32.totalorder %s186, %s187
      %p196 = scmp.eq.s32.totalorder %s29, 0
      %p197 = por %p195, %p196
      %p198 = scmp.ne.s32.totalorder %s186, %s187
      %p199 = scmp.eq.s32.totalorder %s30, 5
      %p200 = por %p198, %p199
      %p202 = scmp.ne.s32.totalorder %s187, %s201
      %p203 = scmp.eq.s32.totalorder %s30, 0
      %p204 = por %p202, %p203
      %s206 = sadd.s32 %s205, 1
      %p209 = scmp.eq.s32.totalorder %s24, 5
      %p210 = scmp.ne.s32.totalorder %s205, %s207
      %p211 = scmp.eq.s32.totalorder %s24, 0
      %p212 = por %p210, %p211
      %p213 = scmp.ne.s32.totalorder %s205, %s207
      %p214 = scmp.eq.s32.totalorder %s29, 5
      %p215 = por %p213, %p214
      %p216 = scmp.ne.s32.totalorder %s207, %s208
      %p217 = scmp.eq.s32.totalorder %s29, 0
      %p218 = por %p216, %p217
      %p219 = scmp.ne.s32.totalorder %s207, %s208
      %p220 = scmp.eq.s32.totalorder %s30, 5
      %p221 = por %p219, %p220
      %p223 = scmp.ne.s32.totalorder %s208, %s222
      %p224 = scmp.eq.s32.totalorder %s30, 0
      %p225 = por %p223, %p224
      %s227 = sadd.s32 %s226, 1
      %p230 = scmp.eq.s32.totalorder %s24, 5
      %p231 = scmp.ne.s32.totalorder %s226, %s228
      %p232 = scmp.eq.s32.totalorder %s24, 0
      %p233 = por %p231, %p232
      %p234 = scmp.ne.s32.totalorder %s226, %s228
      %p235 = scmp.eq.s32.totalorder %s29, 5
      %p236 = por %p234, %p235
      %p237 = scmp.ne.s32.totalorder %s228, %s229
      %p238 = scmp.eq.s32.totalorder %s29, 0
      %p239 = por %p237, %p238
      %p240 = scmp.ne.s32.totalorder %s228, %s229
      %p241 = scmp.eq.s32.totalorder %s30, 5
      %p242 = por %p240, %p241
      %p244 = scmp.ne.s32.totalorder %s229, %s243
      %p245 = scmp.eq.s32.totalorder %s30, 0
      %p246 = por %p244, %p245
      %s248 = sadd.s32 %s247, 1
      %p251 = scmp.eq.s32.totalorder %s24, 5
      %p252 = scmp.ne.s32.totalorder %s247, %s249
      %p253 = scmp.eq.s32.totalorder %s24, 0
      %p254 = por %p252, %p253
      %p255 = scmp.ne.s32.totalorder %s247, %s249
      %p256 = scmp.eq.s32.totalorder %s29, 5
      %p257 = por %p255, %p256
      %p258 = scmp.ne.s32.totalorder %s249, %s250
      %p259 = scmp.eq.s32.totalorder %s29, 0
      %p260 = por %p258, %p259
      %p261 = scmp.ne.s32.totalorder %s249, %s250
      %p262 = scmp.eq.s32.totalorder %s30, 5
      %p263 = por %p261, %p262
      %p265 = scmp.ne.s32.totalorder %s250, %s264
      %p266 = scmp.eq.s32.totalorder %s30, 0
      %p267 = por %p265, %p266
      %s269 = sadd.s32 %s268, 1
      %p272 = scmp.eq.s32.totalorder %s24, 5
      %p273 = scmp.ne.s32.totalorder %s268, %s270
      %p274 = scmp.eq.s32.totalorder %s24, 0
      %p275 = por %p273, %p274
      %p276 = scmp.ne.s32.totalorder %s268, %s270
      %p277 = scmp.eq.s32.totalorder %s29, 5
      %p278 = por %p276, %p277
      %p279 = scmp.ne.s32.totalorder %s270, %s271
      %p280 = scmp.eq.s32.totalorder %s29, 0
      %p281 = por %p279, %p280
      %p282 = scmp.ne.s32.totalorder %s270, %s271
      %p283 = scmp.eq.s32.totalorder %s30, 5
      %p284 = por %p282, %p283
      %p286 = scmp.ne.s32.totalorder %s271, %s285
      %p287 = scmp.eq.s32.totalorder %s30, 0
      %p288 = por %p286, %p287
      %s290 = sadd.s32 %s289, 1
      %p293 = scmp.eq.s32.totalorder %s24, 5
      %p294 = scmp.ne.s32.totalorder %s289, %s291
      %p295 = scmp.eq.s32.totalorder %s24, 0
      %p296 = por %p294, %p295
      %p297 = scmp.ne.s32.totalorder %s289, %s291
      %p298 = scmp.eq.s32.totalorder %s29, 5
      %p299 = por %p297, %p298
      %p300 = scmp.ne.s32.totalorder %s291, %s292
      %p301 = scmp.eq.s32.totalorder %s29, 0
      %p302 = por %p300, %p301
      %p303 = scmp.ne.s32.totalorder %s291, %s292
      %p304 = scmp.eq.s32.totalorder %s30, 5
      %p305 = por %p303, %p304
      %p307 = scmp.ne.s32.totalorder %s292, %s306
      %p308 = scmp.eq.s32.totalorder %s30, 0
      %p309 = por %p307, %p308
      %s311 = sadd.s32 %s310, 1
      %p314 = scmp.eq.s32.totalorder %s24, 5
      %p315 = scmp.ne.s32.totalorder %s310, %s312
      %p316 = scmp.eq.s32.totalorder %s24, 0
      %p317 = por %p315, %p316
      %p318 = scmp.ne.s32.totalorder %s310, %s312
      %p319 = scmp.eq.s32.totalorder %s29, 5
      %p320 = por %p318, %p319
      %p321 = scmp.ne.s32.totalorder %s312, %s313
      %p322 = scmp.eq.s32.totalorder %s29, 0
      %p323 = por %p321, %p322
      %p324 = scmp.ne.s32.totalorder %s312, %s313
      %p325 = scmp.eq.s32.totalorder %s30, 5
      %p326 = por %p324, %p325
      %p328 = scmp.ne.s32.totalorder %s313, %s327
      %p329 = scmp.eq.s32.totalorder %s30, 0
      %p330 = por %p328, %p329
      %s331 = ssub.s32 %s32, %s39
      %s332 = ssub.s32 %s31, %s43
      %s333 = sor.u32 %s331, %s332
      %p334 = scmp.eq.s32.totalorder %s333, 0
      %s336 = sadd.s32 %s335, 1
      %s337 = scalar_select %p334, %s335, %s336
      %p340 = pneg %p334
      %p341 = scmp.eq.s32.totalorder %s24, 5
      %p342 = por %p340, %p341
      %p343 = scmp.ne.s32.totalorder %s335, %s338
      %p344 = scmp.eq.s32.totalorder %s24, 0
      %p345 = por %p343, %p344
      %p346 = scmp.ne.s32.totalorder %s335, %s338
      %p347 = scmp.eq.s32.totalorder %s29, 5
      %p348 = por %p346, %p347
      %p349 = scmp.ne.s32.totalorder %s338, %s339
      %p350 = scmp.eq.s32.totalorder %s29, 0
      %p351 = por %p349, %p350
      %p352 = scmp.ne.s32.totalorder %s338, %s339
      %p353 = scmp.eq.s32.totalorder %s30, 5
      %p354 = por %p352, %p353
      %p356 = scmp.ne.s32.totalorder %s339, %s355
      %p357 = scmp.eq.s32.totalorder %s30, 0
      %p358 = por %p356, %p357
      %p359 = scmp.le.s32.totalorder 1, %s24
      %p360 = scmp.lt.s32.totalorder %s24, 7
      %p361 = pnand %p359, %p360
      %p362 = pneg %p361
      // Predicated region
      $region9: #{tpu_custom_call.1} parent=5 // pred_check
        _
      $region10: #{tpu_custom_call.1} parent=5 // pred_check_branch
        %364 = sbr.rel (%p361) target = $region12
      $region11: #{tpu_custom_call.1} parent=5 // pred_region
        %s365 = ssub.s32 %s24, 1
        // Predicated region
        $region13: #{tpu_custom_call.1} parent=11 // pred_check
          %p366 = pneg %p113
        $region14: #{tpu_custom_call.1} parent=11 // pred_check_branch
          %368 = sbr.rel (%p366) target = $region16
        $region15: #{tpu_custom_call.1} parent=11 // pred_region
          %370 = vsyncadd [#allocation8], 0
          %s371 = sshll.u32 %s2, 4
          %s372 = int_to_ptr.hbm [resolvable:$true] %s371
          %s373 = sshll.u32 [#allocation7], 4
          %s374 = int_to_ptr.vmem [resolvable:$true] %s373
          %379 = dma.hbm_to_vmem [thread:$0]  %s372, 768, %s374, [#allocation8], 384, 384, 24
        $region16: #{tpu_custom_call.1} parent=11 // pred_fallthru
          _
        // Predicated region
        $region17: #{tpu_custom_call.1} parent=11 // pred_check
          %p380 = pneg %p134
        $region18: #{tpu_custom_call.1} parent=11 // pred_check_branch
          %382 = sbr.rel (%p380) target = $region20
        $region19: #{tpu_custom_call.1} parent=11 // pred_region
          _
        $region20: #{tpu_custom_call.1} parent=11 // pred_fallthru
          _
        // Predicated region
        $region21: #{tpu_custom_call.1} parent=11 // pred_check
          %p383 = pneg %p155
        $region22: #{tpu_custom_call.1} parent=11 // pred_check_branch
          %385 = sbr.rel (%p383) target = $region24
        $region23: #{tpu_custom_call.1} parent=11 // pred_region
          %387 = vsyncadd [#allocation11], 0
          %s388 = sshll.u32 %s4, 4
          %s389 = int_to_ptr.hbm [resolvable:$true] %s388
          %s390 = sshll.u32 [#allocation10], 4
          %s391 = int_to_ptr.vmem [resolvable:$true] %s390
          %396 = dma.hbm_to_vmem [thread:$0]  %s389, 6144, %s391, [#allocation11], 384, 384, 24
        $region24: #{tpu_custom_call.1} parent=11 // pred_fallthru
          _
        // Predicated region
        $region25: #{tpu_custom_call.1} parent=11 // pred_check
          %p397 = pneg %p176
        $region26: #{tpu_custom_call.1} parent=11 // pred_check_branch
          %399 = sbr.rel (%p397) target = $region28
        $region27: #{tpu_custom_call.1} parent=11 // pred_region
          _
        $region28: #{tpu_custom_call.1} parent=11 // pred_fallthru
          _
        // Predicated region
        $region29: #{tpu_custom_call.1} parent=11 // pred_check
          %p400 = pneg %p197
        $region30: #{tpu_custom_call.1} parent=11 // pred_check_branch
          %402 = sbr.rel (%p400) target = $region32
        $region31: #{tpu_custom_call.1} parent=11 // pred_region
          _
        $region32: #{tpu_custom_call.1} parent=11 // pred_fallthru
          _
        // Predicated region
        $region33: #{tpu_custom_call.1} parent=11 // pred_check
          %p403 = pneg %p218
        $region34: #{tpu_custom_call.1} parent=11 // pred_check_branch
          %405 = sbr.rel (%p403) target = $region36
        $region35: #{tpu_custom_call.1} parent=11 // pred_region
          _
        $region36: #{tpu_custom_call.1} parent=11 // pred_fallthru
          _
        // Predicated region
        $region37: #{tpu_custom_call.1} parent=11 // pred_check
          %p406 = pneg %p239
        $region38: #{tpu_custom_call.1} parent=11 // pred_check_branch
          %408 = sbr.rel (%p406) target = $region40
        $region39: #{tpu_custom_call.1} parent=11 // pred_region
          _
        $region40: #{tpu_custom_call.1} parent=11 // pred_fallthru
          _
        // Predicated region
        $region41: #{tpu_custom_call.1} parent=11 // pred_check
          %p409 = pneg %p260
        $region42: #{tpu_custom_call.1} parent=11 // pred_check_branch
          %411 = sbr.rel (%p409) target = $region44
        $region43: #{tpu_custom_call.1} parent=11 // pred_region
          %413 = vsyncadd [#allocation11], 0
          %s414 = sshll.u32 %s9, 4
          %s415 = int_to_ptr.hbm [resolvable:$true] %s414
          %s416 = sshll.u32 [#allocation12], 4
          %s417 = int_to_ptr.vmem [resolvable:$true] %s416
          %422 = dma.hbm_to_vmem [thread:$0]  %s415, 2048, %s417, [#allocation11], 128, 128, 8
        $region44: #{tpu_custom_call.1} parent=11 // pred_fallthru
          _
        // Predicated region
        $region45: #{tpu_custom_call.1} parent=11 // pred_check
          %p423 = pneg %p281
        $region46: #{tpu_custom_call.1} parent=11 // pred_check_branch
          %425 = sbr.rel (%p423) target = $region48
        $region47: #{tpu_custom_call.1} parent=11 // pred_region
          _
        $region48: #{tpu_custom_call.1} parent=11 // pred_fallthru
          _
        // Predicated region
        $region49: #{tpu_custom_call.1} parent=11 // pred_check
          %p426 = pneg %p302
        $region50: #{tpu_custom_call.1} parent=11 // pred_check_branch
          %428 = sbr.rel (%p426) target = $region52
        $region51: #{tpu_custom_call.1} parent=11 // pred_region
          _
        $region52: #{tpu_custom_call.1} parent=11 // pred_fallthru
          _
        // Predicated region
        $region53: #{tpu_custom_call.1} parent=11 // pred_check
          %p429 = pneg %p323
        $region54: #{tpu_custom_call.1} parent=11 // pred_check_branch
          %431 = sbr.rel (%p429) target = $region56
        $region55: #{tpu_custom_call.1} parent=11 // pred_region
          _
        $region56: #{tpu_custom_call.1} parent=11 // pred_fallthru
          _
      $region12: #{tpu_custom_call.1} parent=5 // pred_fallthru
        _
      %p432 = scmp.lt.s32.totalorder %s24, 6
      // Predicated region
      $region57: #{tpu_custom_call.1} parent=5 // pred_check
        %p433 = pneg %p432
      $region58: #{tpu_custom_call.1} parent=5 // pred_check_branch
        %435 = sbr.rel (%p433) target = $region60
      $region59: #{tpu_custom_call.1} parent=5 // pred_region
        // Predicated region
        $region61: #{tpu_custom_call.1} parent=59 // pred_check
          %p436 = pneg %p58
        $region62: #{tpu_custom_call.1} parent=59 // pred_check_branch
          %438 = sbr.rel (%p436) target = $region64
        $region63: #{tpu_custom_call.1} parent=59 // pred_region
          %s439 = sand.u32 %s48, 1
          %s440 = sand.u32 %s48, 1
          %s441 = smul.addr %s440, 24
          %s442 = scalar_lea.vmem [#allocation5], %s441
          %s443 = smul.u32 3, %s32
          %s444 = smul.addr %s443, 2
          %s445 = sadd.s32 %s31, %s444
          %s446 = smul.addr %s445, 8
          %s447 = scalar_lea.vmem %s0, %s446
          // Predicated region
          $region65: #{tpu_custom_call.1} parent=63 // pred_check
            _
          $region66: #{tpu_custom_call.1} parent=63 // pred_check_branch
            %449 = sbr.rel (0) target = $region68
          $region67: #{tpu_custom_call.1} parent=63 // pred_region
            // Predicated region
            $region69: #{tpu_custom_call.1} parent=67 // pred_check
              _
            $region70: #{tpu_custom_call.1} parent=67 // pred_check_branch
              %451 = sbr.rel (0) target = $region72
            $region71: #{tpu_custom_call.1} parent=67 // pred_region
              // Predicated region
              $region84: #{tpu_custom_call.1} parent=71 // pred_check
                _
              $region85: #{tpu_custom_call.1} parent=71 // pred_check_branch
                %471 = sbr.rel (0) target = $region87
              $region86: #{tpu_custom_call.1} parent=71 // pred_region
                loop: start=0, step=1, limit=1
                $region88: #{tpu_custom_call.1} parent=86 // loop_pre_header
                  _
                $region89: #{tpu_custom_call.1} parent=86 // loop_header
                  %s473 = sphi 0, %s477
                  %p474 = scmp.ge.s32.totalorder %s473, 1
                  %s478 = sphi %s447, %s447
                  %s479 = sphi %s442, %s442
                $region90: #{tpu_custom_call.1} parent=86 // loop_header_branch
                  %476 = sbr.rel (%p474) target = $region94
                $region91: #{tpu_custom_call.1} parent=86 // loop_body
                  %v480 = vld [vmem:[%s478] sm:$0xff]
                  %481 = vst [vmem:[%s479] sm:$0xff] %v480
                  %v482 = vld [vmem:[%s478 + $0x10] sm:$0xff]
                  %483 = vst [vmem:[%s479 + $0x8] sm:$0xff] %v482
                  %v484 = vld [vmem:[%s478 + $0x20] sm:$0xff]
                  %485 = vst [vmem:[%s479 + $0x10] sm:$0xff] %v484
                $region92: #{tpu_custom_call.1} parent=86 // loop_footer
                  %s477 = sadd.s32 1, %s473
                $region93: #{tpu_custom_call.1} parent=86 // loop_footer_branch
                  %472 = sbr.rel target = $region89
                $region94: #{tpu_custom_call.1} parent=86 // loop_exit
                  _
              $region87: #{tpu_custom_call.1} parent=71 // pred_fallthru
                _
              // Predicated region
              $region95: #{tpu_custom_call.1} parent=71 // pred_check
                _
              $region96: #{tpu_custom_call.1} parent=71 // pred_check_branch
                %487 = sbr.rel target = $region98
              $region97: #{tpu_custom_call.1} parent=71 // pred_region
                _
              $region98: #{tpu_custom_call.1} parent=71 // pred_fallthru
                _
            $region72: #{tpu_custom_call.1} parent=67 // pred_fallthru
              _
            // Predicated region
            $region73: #{tpu_custom_call.1} parent=67 // pred_check
              _
            $region74: #{tpu_custom_call.1} parent=67 // pred_check_branch
              %453 = sbr.rel target = $region76
            $region75: #{tpu_custom_call.1} parent=67 // pred_region
              %s455 = ssub.s32 256, 1
              loop: start=0, step=1, limit=1
              $region77: #{tpu_custom_call.1} parent=75 // loop_pre_header
                _
              $region78: #{tpu_custom_call.1} parent=75 // loop_header
                %s457 = sphi 0, %s461
                %p458 = scmp.ge.s32.totalorder %s457, 1
                %s462 = sphi %s447, %s447
                %s463 = sphi %s442, %s442
              $region79: #{tpu_custom_call.1} parent=75 // loop_header_branch
                %460 = sbr.rel (%p458) target = $region83
              $region80: #{tpu_custom_call.1} parent=75 // loop_body
                %v464 = vld [vmem:[%s462] sm:%s455]
                %465 = vst [vmem:[%s463] sm:%s455] %v464
                %v466 = vld [vmem:[%s462 + $0x10] sm:%s455]
                %467 = vst [vmem:[%s463 + $0x8] sm:%s455] %v466
                %v468 = vld [vmem:[%s462 + $0x20] sm:%s455]
                %469 = vst [vmem:[%s463 + $0x10] sm:%s455] %v468
              $region81: #{tpu_custom_call.1} parent=75 // loop_footer
                %s461 = sadd.s32 1, %s457
              $region82: #{tpu_custom_call.1} parent=75 // loop_footer_branch
                %456 = sbr.rel target = $region78
              $region83: #{tpu_custom_call.1} parent=75 // loop_exit
                _
            $region76: #{tpu_custom_call.1} parent=67 // pred_fallthru
              _
          $region68: #{tpu_custom_call.1} parent=63 // pred_fallthru
            _
          %488 = vnop
        $region64: #{tpu_custom_call.1} parent=59 // pred_fallthru
          _
        // Predicated region
        $region99: #{tpu_custom_call.1} parent=59 // pred_check
          %p489 = pneg %p86
        $region100: #{tpu_custom_call.1} parent=59 // pred_check_branch
          %491 = sbr.rel (%p489) target = $region102
        $region101: #{tpu_custom_call.1} parent=59 // pred_region
          %s492 = sand.u32 %s76, 1
          %s493 = sand.u32 %s76, 1
          %s494 = smul.addr %s493, 24
          %s495 = scalar_lea.vmem [#allocation6], %s494
          %s496 = smul.u32 3, %s32
          %s497 = smul.addr %s496, 2
          %s498 = sadd.s32 %s31, %s497
          %s499 = smul.addr %s498, 8
          %s500 = scalar_lea.vmem %s1, %s499
          // Predicated region
          $region103: #{tpu_custom_call.1} parent=101 // pred_check
            _
          $region104: #{tpu_custom_call.1} parent=101 // pred_check_branch
            %502 = sbr.rel (0) target = $region106
          $region105: #{tpu_custom_call.1} parent=101 // pred_region
            // Predicated region
            $region107: #{tpu_custom_call.1} parent=105 // pred_check
              _
            $region108: #{tpu_custom_call.1} parent=105 // pred_check_branch
              %504 = sbr.rel (0) target = $region110
            $region109: #{tpu_custom_call.1} parent=105 // pred_region
              // Predicated region
              $region122: #{tpu_custom_call.1} parent=109 // pred_check
                _
              $region123: #{tpu_custom_call.1} parent=109 // pred_check_branch
                %524 = sbr.rel (0) target = $region125
              $region124: #{tpu_custom_call.1} parent=109 // pred_region
                loop: start=0, step=1, limit=1
                $region126: #{tpu_custom_call.1} parent=124 // loop_pre_header
                  _
                $region127: #{tpu_custom_call.1} parent=124 // loop_header
                  %s526 = sphi 0, %s530
                  %p527 = scmp.ge.s32.totalorder %s526, 1
                  %s531 = sphi %s500, %s500
                  %s532 = sphi %s495, %s495
                $region128: #{tpu_custom_call.1} parent=124 // loop_header_branch
                  %529 = sbr.rel (%p527) target = $region132
                $region129: #{tpu_custom_call.1} parent=124 // loop_body
                  %v533 = vld [vmem:[%s531] sm:$0xff]
                  %534 = vst [vmem:[%s532] sm:$0xff] %v533
                  %v535 = vld [vmem:[%s531 + $0x10] sm:$0xff]
                  %536 = vst [vmem:[%s532 + $0x8] sm:$0xff] %v535
                  %v537 = vld [vmem:[%s531 + $0x20] sm:$0xff]
                  %538 = vst [vmem:[%s532 + $0x10] sm:$0xff] %v537
                $region130: #{tpu_custom_call.1} parent=124 // loop_footer
                  %s530 = sadd.s32 1, %s526
                $region131: #{tpu_custom_call.1} parent=124 // loop_footer_branch
                  %525 = sbr.rel target = $region127
                $region132: #{tpu_custom_call.1} parent=124 // loop_exit
                  _
              $region125: #{tpu_custom_call.1} parent=109 // pred_fallthru
                _
              // Predicated region
              $region133: #{tpu_custom_call.1} parent=109 // pred_check
                _
              $region134: #{tpu_custom_call.1} parent=109 // pred_check_branch
                %540 = sbr.rel target = $region136
              $region135: #{tpu_custom_call.1} parent=109 // pred_region
                _
              $region136: #{tpu_custom_call.1} parent=109 // pred_fallthru
                _
            $region110: #{tpu_custom_call.1} parent=105 // pred_fallthru
              _
            // Predicated region
            $region111: #{tpu_custom_call.1} parent=105 // pred_check
              _
            $region112: #{tpu_custom_call.1} parent=105 // pred_check_branch
              %506 = sbr.rel target = $region114
            $region113: #{tpu_custom_call.1} parent=105 // pred_region
              %s508 = ssub.s32 256, 1
              loop: start=0, step=1, limit=1
              $region115: #{tpu_custom_call.1} parent=113 // loop_pre_header
                _
              $region116: #{tpu_custom_call.1} parent=113 // loop_header
                %s510 = sphi 0, %s514
                %p511 = scmp.ge.s32.totalorder %s510, 1
                %s515 = sphi %s500, %s500
                %s516 = sphi %s495, %s495
              $region117: #{tpu_custom_call.1} parent=113 // loop_header_branch
                %513 = sbr.rel (%p511) target = $region121
              $region118: #{tpu_custom_call.1} parent=113 // loop_body
                %v517 = vld [vmem:[%s515] sm:%s508]
                %518 = vst [vmem:[%s516] sm:%s508] %v517
                %v519 = vld [vmem:[%s515 + $0x10] sm:%s508]
                %520 = vst [vmem:[%s516 + $0x8] sm:%s508] %v519
                %v521 = vld [vmem:[%s515 + $0x20] sm:%s508]
                %522 = vst [vmem:[%s516 + $0x10] sm:%s508] %v521
              $region119: #{tpu_custom_call.1} parent=113 // loop_footer
                %s514 = sadd.s32 1, %s510
              $region120: #{tpu_custom_call.1} parent=113 // loop_footer_branch
                %509 = sbr.rel target = $region116
              $region121: #{tpu_custom_call.1} parent=113 // loop_exit
                _
            $region114: #{tpu_custom_call.1} parent=105 // pred_fallthru
              _
          $region106: #{tpu_custom_call.1} parent=101 // pred_fallthru
            _
          %541 = vnop
        $region102: #{tpu_custom_call.1} parent=59 // pred_fallthru
          _
      $region60: #{tpu_custom_call.1} parent=5 // pred_fallthru
        _
      %p542 = scmp.le.s32.totalorder 1, %s24
      %p543 = scmp.lt.s32.totalorder %s24, 7
      %p544 = pnand %p542, %p543
      %p545 = pneg %p544
      // Predicated region
      $region137: #{tpu_custom_call.1} parent=5 // pred_check
        _
      $region138: #{tpu_custom_call.1} parent=5 // pred_check_branch
        %547 = sbr.rel (%p544) target = $region140
      $region139: #{tpu_custom_call.1} parent=5 // pred_region
        %s548 = ssub.s32 %s24, 1
        %s549 = sand.u32 %s51, 1
        %s550 = sand.u32 %s51, 1
        %s551 = smul.addr %s550, 24
        %s552 = scalar_lea.vmem [#allocation5], %s551
        // Predicated region
        $region141: #{tpu_custom_call.1} parent=139 // pred_check
          %p553 = pneg %p64
        $region142: #{tpu_custom_call.1} parent=139 // pred_check_branch
          %555 = sbr.rel (%p553) target = $region144
        $region143: #{tpu_custom_call.1} parent=139 // pred_region
          _
        $region144: #{tpu_custom_call.1} parent=139 // pred_fallthru
          _
        %s556 = sand.u32 %s79, 1
        %s557 = sand.u32 %s79, 1
        %s558 = smul.addr %s557, 24
        %s559 = scalar_lea.vmem [#allocation6], %s558
        // Predicated region
        $region145: #{tpu_custom_call.1} parent=139 // pred_check
          %p560 = pneg %p92
        $region146: #{tpu_custom_call.1} parent=139 // pred_check_branch
          %562 = sbr.rel (%p560) target = $region148
        $region147: #{tpu_custom_call.1} parent=139 // pred_region
          _
        $region148: #{tpu_custom_call.1} parent=139 // pred_fallthru
          _
        // Predicated region
        $region149: #{tpu_custom_call.1} parent=139 // pred_check
          %p563 = pneg %p113
        $region150: #{tpu_custom_call.1} parent=139 // pred_check_branch
          %565 = sbr.rel (%p563) target = $region152
        $region151: #{tpu_custom_call.1} parent=139 // pred_region
          %567 = dma.done [#allocation8], 768
        $region152: #{tpu_custom_call.1} parent=139 // pred_fallthru
          _
        // Predicated region
        $region153: #{tpu_custom_call.1} parent=139 // pred_check
          %p568 = pneg %p155
        $region154: #{tpu_custom_call.1} parent=139 // pred_check_branch
          %570 = sbr.rel (%p568) target = $region156
        $region155: #{tpu_custom_call.1} parent=139 // pred_region
          %572 = dma.done [#allocation11], 6144
        $region156: #{tpu_custom_call.1} parent=139 // pred_fallthru
          _
        // Predicated region
        $region157: #{tpu_custom_call.1} parent=139 // pred_check
          %p573 = pneg %p260
        $region158: #{tpu_custom_call.1} parent=139 // pred_check_branch
          %575 = sbr.rel (%p573) target = $region160
        $region159: #{tpu_custom_call.1} parent=139 // pred_region
          %577 = dma.done [#allocation11], 2048
        $region160: #{tpu_custom_call.1} parent=139 // pred_fallthru
          _
        %s578 = sand.u32 %s51, 1
        %s579 = sand.u32 %s51, 1
        %s580 = smul.addr %s579, 24
        %s581 = scalar_lea.vmem [#allocation5], %s580
        %p582 = pneg %p64
        %p583 = pneg %p61
        %s584 = sand.u32 %s79, 1
        %s585 = sand.u32 %s79, 1
        %s586 = smul.addr %s585, 24
        %s587 = scalar_lea.vmem [#allocation6], %s586
        %p588 = pneg %p92
        %p589 = pneg %p89
        %p590 = pneg %p113
        %p591 = pneg %p110
        %p592 = pneg %p134
        %p593 = pneg %p131
        %p594 = pneg %p155
        %p595 = pneg %p152
        %p596 = pneg %p176
        %p597 = pneg %p173
        %p598 = pneg %p197
        %p599 = pneg %p194
        %p600 = pneg %p218
        %p601 = pneg %p215
        %p602 = pneg %p239
        %p603 = pneg %p236
        %p604 = pneg %p260
        %p605 = pneg %p257
        %p606 = pneg %p281
        %p607 = pneg %p278
        %p608 = pneg %p302
        %p609 = pneg %p299
        %p610 = pneg %p323
        %p611 = pneg %p320
        %p612 = pneg %p351
        %p613 = pneg %p348
        %s614 = sand.u32 %s338, 1
        %s615 = scalar_lea.sflag [#allocation9], %s614
        %s616 = sand.u32 %s338, 1
        %s617 = smul.addr %s616, 24
        %s618 = scalar_lea.vmem [#allocation13], %s617
        %s619 = smul.u32 3, %s34
        %s620 = smul.u32 3, %s34
        %s621 = smul.u32 3, %s34
        %p622 = scmp.eq.s32.totalorder %s34, 0
        // Predicated region
        $region161: #{tpu_custom_call.1} parent=139 // pred_check
          %p623 = pneg %p622
        $region162: #{tpu_custom_call.1} parent=139 // pred_check_branch
          %625 = sbr.rel (%p623) target = $region164
        $region163: #{tpu_custom_call.1} parent=139 // pred_region
          %626 = vst [vmem:[#allocation2] sm:$0xff] 0.0
        $region164: #{tpu_custom_call.1} parent=139 // pred_fallthru
          _
        %v627 = vld [vmem:[%s559] sm:$0xff]
        %v628 = vld [vmem:[%s559 + $0x8] sm:$0xff]
        %v629 = vld [vmem:[%s559 + $0x10] sm:$0xff]
        %v630 = vld [vmem:[%s3] sm:$0xff]
        %v631 = vld [vmem:[%s3 + $0x8] sm:$0xf]
        %v632 = vld [vmem:[%s5] sm:$0x7]
        %v634 = vperm.slane %v632, 0
        %v635 = vperm.slane %v632, 1
        %v636 = vperm.slane %v632, 2
        %642 = vst [vmem:[#allocation1] ss:$2 sm:$0xff] %v630
        %s643 = scalar_lea.vmem [#allocation1], 16
        %644 = vst [vmem:[%s643] ss:$2 sm:$0xff] %v631
        %v645 = vld.sshfl [vmem:[#allocation1] sm:$0xff pattern:$0x75316420]
        %v646 = vld.sshfl [vmem:[#allocation1 + $0x8] sm:$0xff pattern:$0x75316420]
        %v647 = vld.sshfl [vmem:[#allocation1 + $0x10] sm:$0xff pattern:$0x75316420]
        %vm648 = vcmask 31744
        %v650 = vsel %vm648, %v627, 0
        %v653 = vsel %vm648, %v628, 0
        %v656 = vsel %vm648, %v629, 0
        %vm658 = vcmask 1043456
        %v659 = vsel %vm658, %v645, 0
        %v661 = vsel %vm658, %v646, 0
        %v663 = vsel %vm658, %v647, 0
        %665 = vmatpush.msra.mxu0 0.0
        %666 = vmatpush.msra.mxu0 0.0
        %667 = vmatpush.msra.mxu0 0.0
        %668 = vmatpush.msra.mxu0 0.0
        %669 = vmatpush.msra.mxu0 0.0
        %670 = vmatpush.msra.mxu0 0.0
        %671 = vmatpush.msra.mxu0 0.0
        %672 = vmatpush.msra.mxu0 0.0
        %673 = vmatpush.msra.mxu0 0.0
        %674 = vmatpush.msra.mxu0 0.0
        %675 = vmatpush.msra.mxu0 0.0
        %676 = vmatpush.msra.mxu0 0.0
        %677 = vmatpush.msra.mxu0 0.0
        %678 = vmatpush.msra.mxu0 0.0
        %679 = vmatpush.msra.mxu0 0.0
        %680 = vmatpush.msra.mxu0 %v659
        %681 = vmatmul.f32.gmra.mxu0 %v650
        %v682 = vpop.f32.mrf.mxu0
        %v683 = vadd.f32 %v634, %v682
        %684 = vmatmul.f32.gmra.mxu0 %v653
        %v685 = vpop.f32.mrf.mxu0
        %v686 = vadd.f32 %v634, %v685
        %687 = vmatmul.f32.gmra.mxu0 %v656
        %v688 = vpop.f32.mrf.mxu0
        %v689 = vadd.f32 %v634, %v688
        %690 = vdwg.mxu0
        %691 = vmatpush.msra.mxu0 0.0
        %692 = vmatpush.msra.mxu0 0.0
        %693 = vmatpush.msra.mxu0 0.0
        %694 = vmatpush.msra.mxu0 0.0
        %695 = vmatpush.msra.mxu0 0.0
        %696 = vmatpush.msra.mxu0 0.0
        %697 = vmatpush.msra.mxu0 0.0
        %698 = vmatpush.msra.mxu0 0.0
        %699 = vmatpush.msra.mxu0 0.0
        %700 = vmatpush.msra.mxu0 0.0
        %701 = vmatpush.msra.mxu0 0.0
        %702 = vmatpush.msra.mxu0 0.0
        %703 = vmatpush.msra.mxu0 0.0
        %704 = vmatpush.msra.mxu0 0.0
        %705 = vmatpush.msra.mxu0 0.0
        %706 = vmatpush.msra.mxu0 %v661
        %707 = vmatmul.f32.gmra.mxu0 %v650
        %v708 = vpop.f32.mrf.mxu0
        %v709 = vadd.f32 %v635, %v708
        %710 = vmatmul.f32.gmra.mxu0 %v653
        %v711 = vpop.f32.mrf.mxu0
        %v712 = vadd.f32 %v635, %v711
        %713 = vmatmul.f32.gmra.mxu0 %v656
        %v714 = vpop.f32.mrf.mxu0
        %v715 = vadd.f32 %v635, %v714
        %716 = vdwg.mxu0
        %717 = vmatpush.msra.mxu0 0.0
        %718 = vmatpush.msra.mxu0 0.0
        %719 = vmatpush.msra.mxu0 0.0
        %720 = vmatpush.msra.mxu0 0.0
        %721 = vmatpush.msra.mxu0 0.0
        %722 = vmatpush.msra.mxu0 0.0
        %723 = vmatpush.msra.mxu0 0.0
        %724 = vmatpush.msra.mxu0 0.0
        %725 = vmatpush.msra.mxu0 0.0
        %726 = vmatpush.msra.mxu0 0.0
        %727 = vmatpush.msra.mxu0 0.0
        %728 = vmatpush.msra.mxu0 0.0
        %729 = vmatpush.msra.mxu0 0.0
        %730 = vmatpush.msra.mxu0 0.0
        %731 = vmatpush.msra.mxu0 0.0
        %732 = vmatpush.msra.mxu0 %v663
        %733 = vmatmul.f32.gmra.mxu0 %v650
        %v734 = vpop.f32.mrf.mxu0
        %v735 = vadd.f32 %v636, %v734
        %736 = vmatmul.f32.gmra.mxu0 %v653
        %v737 = vpop.f32.mrf.mxu0
        %v738 = vadd.f32 %v636, %v737
        %739 = vmatmul.f32.gmra.mxu0 %v656
        %v740 = vpop.f32.mrf.mxu0
        %v741 = vadd.f32 %v636, %v740
        %742 = vdwg.mxu0
        %743 = vst [vmem:[#allocation3] sm:$0xff] %v683
        %744 = vst [vmem:[#allocation3 + $0x8] sm:$0xff] %v709
        %745 = vst [vmem:[#allocation3 + $0x10] sm:$0xff] %v735
        %746 = vst [vmem:[#allocation3 + $0x18] sm:$0xff] %v686
        %747 = vst [vmem:[#allocation3 + $0x20] sm:$0xff] %v712
        %748 = vst [vmem:[#allocation3 + $0x28] sm:$0xff] %v738
        %749 = vst [vmem:[#allocation3 + $0x30] sm:$0xff] %v689
        %750 = vst [vmem:[#allocation3 + $0x38] sm:$0xff] %v715
        %751 = vst [vmem:[#allocation3 + $0x40] sm:$0xff] %v741
        %s752 = smul.u32 %s34, 3
        %p753 = scmp.le.s32.totalorder %s752, 4
        // Predicated region
        $region165: #{tpu_custom_call.1} parent=139 // pred_check
          %p754 = pneg %p753
        $region166: #{tpu_custom_call.1} parent=139 // pred_check_branch
          %756 = sbr.rel (%p754) target = $region168
        $region167: #{tpu_custom_call.1} parent=139 // pred_region
          %v757 = vld [vmem:[%s552] sm:$0xff]
          %v758 = vld [vmem:[%s552 + $0x8] sm:$0xff]
          %v759 = vld [vmem:[%s552 + $0x10] sm:$0xff]
          %v760 = vld [vmem:[#allocation7] sm:$0xff]
          %v761 = vld [vmem:[#allocation7 + $0x8] sm:$0xff]
          %v762 = vld [vmem:[#allocation7 + $0x10] sm:$0xff]
          %v763 = vld [vmem:[#allocation7 + $0x18] sm:$0xff]
          %v764 = vld [vmem:[#allocation7 + $0x20] sm:$0xff]
          %v765 = vld [vmem:[#allocation7 + $0x28] sm:$0xff]
          %vm766 = vcmask 130048
          %v768 = vsel %vm766, %v757, 0
          %v771 = vsel %vm766, %v758, 0
          %v774 = vsel %vm766, %v759, 0
          %776 = vmatpush.msra.mxu0 0.0
          %777 = vmatpush.msra.mxu0 0.0
          %778 = vmatpush.msra.mxu0 0.0
          %779 = vmatpush.msra.mxu0 0.0
          %780 = vmatpush.msra.mxu0 0.0
          %781 = vmatpush.msra.mxu0 0.0
          %782 = vmatpush.msra.mxu0 0.0
          %783 = vmatpush.msra.mxu0 0.0
          %784 = vmatpush.msra.mxu0 0.0
          %785 = vmatpush.msra.mxu0 0.0
          %786 = vmatpush.msra.mxu0 0.0
          %787 = vmatpush.msra.mxu0 0.0
          %788 = vmatpush.msra.mxu0 0.0
          %789 = vmatpush.msra.mxu0 0.0
          %790 = vmatpush.msra.mxu0 %v763
          %791 = vmatpush.msra.mxu0 %v760
          %792 = vmatmul.f32.gmra.mxu0 %v768
          %v793 = vpop.f32.mrf.mxu0
          %v794 = vadd.f32 0.0, %v793
          %795 = vmatmul.f32.gmra.mxu0 %v771
          %v796 = vpop.f32.mrf.mxu0
          %v797 = vadd.f32 0.0, %v796
          %798 = vmatmul.f32.gmra.mxu0 %v774
          %v799 = vpop.f32.mrf.mxu0
          %v800 = vadd.f32 0.0, %v799
          %801 = vdwg.mxu0
          %802 = vmatpush.msra.mxu0 0.0
          %803 = vmatpush.msra.mxu0 0.0
          %804 = vmatpush.msra.mxu0 0.0
          %805 = vmatpush.msra.mxu0 0.0
          %806 = vmatpush.msra.mxu0 0.0
          %807 = vmatpush.msra.mxu0 0.0
          %808 = vmatpush.msra.mxu0 0.0
          %809 = vmatpush.msra.mxu0 0.0
          %810 = vmatpush.msra.mxu0 0.0
          %811 = vmatpush.msra.mxu0 0.0
          %812 = vmatpush.msra.mxu0 0.0
          %813 = vmatpush.msra.mxu0 0.0
          %814 = vmatpush.msra.mxu0 0.0
          %815 = vmatpush.msra.mxu0 0.0
          %816 = vmatpush.msra.mxu0 %v764
          %817 = vmatpush.msra.mxu0 %v761
          %818 = vmatmul.f32.gmra.mxu0 %v768
          %v819 = vpop.f32.mrf.mxu0
          %v820 = vadd.f32 0.0, %v819
          %821 = vmatmul.f32.gmra.mxu0 %v771
          %v822 = vpop.f32.mrf.mxu0
          %v823 = vadd.f32 0.0, %v822
          %824 = vmatmul.f32.gmra.mxu0 %v774
          %v825 = vpop.f32.mrf.mxu0
          %v826 = vadd.f32 0.0, %v825
          %827 = vdwg.mxu0
          %828 = vmatpush.msra.mxu0 0.0
          %829 = vmatpush.msra.mxu0 0.0
          %830 = vmatpush.msra.mxu0 0.0
          %831 = vmatpush.msra.mxu0 0.0
          %832 = vmatpush.msra.mxu0 0.0
          %833 = vmatpush.msra.mxu0 0.0
          %834 = vmatpush.msra.mxu0 0.0
          %835 = vmatpush.msra.mxu0 0.0
          %836 = vmatpush.msra.mxu0 0.0
          %837 = vmatpush.msra.mxu0 0.0
          %838 = vmatpush.msra.mxu0 0.0
          %839 = vmatpush.msra.mxu0 0.0
          %840 = vmatpush.msra.mxu0 0.0
          %841 = vmatpush.msra.mxu0 0.0
          %842 = vmatpush.msra.mxu0 %v765
          %843 = vmatpush.msra.mxu0 %v762
          %844 = vmatmul.f32.gmra.mxu0 %v768
          %v845 = vpop.f32.mrf.mxu0
          %v846 = vadd.f32 0.0, %v845
          %847 = vmatmul.f32.gmra.mxu0 %v771
          %v848 = vpop.f32.mrf.mxu0
          %v849 = vadd.f32 0.0, %v848
          %850 = vmatmul.f32.gmra.mxu0 %v774
          %v851 = vpop.f32.mrf.mxu0
          %v852 = vadd.f32 0.0, %v851
          %853 = vdwg.mxu0
          %854 = vst [vmem:[#allocation4] sm:$0xff] %v794
          %855 = vst [vmem:[#allocation4 + $0x8] sm:$0xff] %v820
          %856 = vst [vmem:[#allocation4 + $0x10] sm:$0xff] %v846
          %857 = vst [vmem:[#allocation4 + $0x18] sm:$0xff] %v797
          %858 = vst [vmem:[#allocation4 + $0x20] sm:$0xff] %v823
          %859 = vst [vmem:[#allocation4 + $0x28] sm:$0xff] %v849
          %860 = vst [vmem:[#allocation4 + $0x30] sm:$0xff] %v800
          %861 = vst [vmem:[#allocation4 + $0x38] sm:$0xff] %v826
          %862 = vst [vmem:[#allocation4 + $0x40] sm:$0xff] %v852
        $region168: #{tpu_custom_call.1} parent=139 // pred_fallthru
          _
        %v863 = vld [vmem:[#allocation7] sm:$0xff]
        %v864 = vld [vmem:[#allocation7 + $0x8] sm:$0xff]
        %v865 = vld [vmem:[#allocation7 + $0x10] sm:$0xff]
        %v866 = vld [vmem:[#allocation7 + $0x18] sm:$0xff]
        %v867 = vld [vmem:[#allocation7 + $0x20] sm:$0xff]
        %v868 = vld [vmem:[#allocation7 + $0x28] sm:$0xff]
        %v869 = vld [vmem:[#allocation10] sm:$0xff]
        %v870 = vld [vmem:[#allocation10 + $0x8] sm:$0xff]
        %v871 = vld [vmem:[#allocation10 + $0x10] sm:$0xff]
        %v872 = vld [vmem:[#allocation10 + $0x18] sm:$0xff]
        %v873 = vld [vmem:[#allocation10 + $0x20] sm:$0xff]
        %v874 = vld [vmem:[#allocation10 + $0x28] sm:$0xff]
        %v875 = vld [vmem:[#allocation10 + $0x30] sm:$0xff]
        %v876 = vld [vmem:[#allocation10 + $0x38] sm:$0xff]
        %v877 = vld [vmem:[#allocation10 + $0x40] sm:$0xff]
        %v878 = vld [vmem:[#allocation10 + $0x48] sm:$0xff]
        %v879 = vld [vmem:[#allocation10 + $0x50] sm:$0xff]
        %v880 = vld [vmem:[#allocation10 + $0x58] sm:$0xff]
        %v881 = vld [vmem:[#allocation10 + $0x60] sm:$0xff]
        %v882 = vld [vmem:[#allocation10 + $0x68] sm:$0xff]
        %v883 = vld [vmem:[#allocation10 + $0x70] sm:$0xff]
        %v884 = vld [vmem:[#allocation10 + $0x78] sm:$0xff]
        %v885 = vld [vmem:[#allocation10 + $0x80] sm:$0xff]
        %v886 = vld [vmem:[#allocation10 + $0x88] sm:$0xff]
        %v887 = vld [vmem:[#allocation10 + $0x90] sm:$0xff]
        %v888 = vld [vmem:[#allocation10 + $0x98] sm:$0xff]
        %v889 = vld [vmem:[#allocation10 + $0xa0] sm:$0xff]
        %v890 = vld [vmem:[#allocation10 + $0xa8] sm:$0xff]
        %v891 = vld [vmem:[#allocation10 + $0xb0] sm:$0xff]
        %v892 = vld [vmem:[#allocation10 + $0xb8] sm:$0xff]
        %v893 = vld [vmem:[#allocation10 + $0xc0] sm:$0xff]
        %v894 = vld [vmem:[#allocation10 + $0xc8] sm:$0xff]
        %v895 = vld [vmem:[#allocation10 + $0xd0] sm:$0xff]
        %v896 = vld [vmem:[#allocation10 + $0xd8] sm:$0xff]
        %v897 = vld [vmem:[#allocation10 + $0xe0] sm:$0xff]
        %v898 = vld [vmem:[#allocation10 + $0xe8] sm:$0xff]
        %v899 = vld [vmem:[#allocation10 + $0xf0] sm:$0xff]
        %v900 = vld [vmem:[#allocation10 + $0xf8] sm:$0xff]
        %v901 = vld [vmem:[#allocation10 + $0x100] sm:$0xff]
        %v902 = vld [vmem:[#allocation10 + $0x108] sm:$0xff]
        %v903 = vld [vmem:[#allocation10 + $0x110] sm:$0xff]
        %v904 = vld [vmem:[#allocation10 + $0x118] sm:$0xff]
        %v905 = vld [vmem:[#allocation10 + $0x120] sm:$0xff]
        %v906 = vld [vmem:[#allocation10 + $0x128] sm:$0xff]
        %v907 = vld [vmem:[#allocation10 + $0x130] sm:$0xff]
        %v908 = vld [vmem:[#allocation10 + $0x138] sm:$0xff]
        %v909 = vld [vmem:[#allocation10 + $0x140] sm:$0xff]
        %v910 = vld [vmem:[#allocation10 + $0x148] sm:$0xff]
        %v911 = vld [vmem:[#allocation10 + $0x150] sm:$0xff]
        %v912 = vld [vmem:[#allocation10 + $0x158] sm:$0xff]
        %v913 = vld [vmem:[#allocation10 + $0x160] sm:$0xff]
        %v914 = vld [vmem:[#allocation10 + $0x168] sm:$0xff]
        %v915 = vld [vmem:[#allocation10 + $0x170] sm:$0xff]
        %v916 = vld [vmem:[#allocation10 + $0x178] sm:$0xff]
        %v917 = vld [vmem:[%s6] sm:$0x7]
        %v918 = vld [vmem:[%s7] sm:$0xff]
        %v919 = vld [vmem:[%s7 + $0x8] sm:$0xff]
        %v920 = vld [vmem:[%s7 + $0x10] sm:$0xff]
        %v921 = vld [vmem:[%s7 + $0x18] sm:$0xff]
        %v922 = vld [vmem:[%s7 + $0x20] sm:$0xff]
        %v923 = vld [vmem:[%s7 + $0x28] sm:$0xff]
        %v924 = vld [vmem:[%s7 + $0x30] sm:$0xff]
        %v925 = vld [vmem:[%s7 + $0x38] sm:$0xff]
        %v926 = vld [vmem:[%s7 + $0x40] sm:$0xff]
        %v927 = vld [vmem:[%s7 + $0x48] sm:$0xff]
        %v928 = vld [vmem:[%s7 + $0x50] sm:$0xff]
        %v929 = vld [vmem:[%s7 + $0x58] sm:$0xff]
        %v930 = vld [vmem:[%s7 + $0x60] sm:$0xff]
        %v931 = vld [vmem:[%s7 + $0x68] sm:$0xff]
        %v932 = vld [vmem:[%s7 + $0x70] sm:$0xff]
        %v933 = vld [vmem:[%s7 + $0x78] sm:$0xff]
        %v934 = vld [vmem:[%s8] sm:$0x1]
        %v935 = vld [vmem:[#allocation12] sm:$0xff]
        %v936 = vld [vmem:[#allocation12 + $0x8] sm:$0xff]
        %v937 = vld [vmem:[#allocation12 + $0x10] sm:$0xff]
        %v938 = vld [vmem:[#allocation12 + $0x18] sm:$0xff]
        %v939 = vld [vmem:[#allocation12 + $0x20] sm:$0xff]
        %v940 = vld [vmem:[#allocation12 + $0x28] sm:$0xff]
        %v941 = vld [vmem:[#allocation12 + $0x30] sm:$0xff]
        %v942 = vld [vmem:[#allocation12 + $0x38] sm:$0xff]
        %v943 = vld [vmem:[#allocation12 + $0x40] sm:$0xff]
        %v944 = vld [vmem:[#allocation12 + $0x48] sm:$0xff]
        %v945 = vld [vmem:[#allocation12 + $0x50] sm:$0xff]
        %v946 = vld [vmem:[#allocation12 + $0x58] sm:$0xff]
        %v947 = vld [vmem:[#allocation12 + $0x60] sm:$0xff]
        %v948 = vld [vmem:[#allocation12 + $0x68] sm:$0xff]
        %v949 = vld [vmem:[#allocation12 + $0x70] sm:$0xff]
        %v950 = vld [vmem:[#allocation12 + $0x78] sm:$0xff]
        %v951 = vld [vmem:[%s10] sm:$0x1]
        %v952 = vld [vmem:[%s11] sm:$0xff]
        %v953 = vld [vmem:[%s11 + $0x8] sm:$0xff]
        %v954 = vld [vmem:[%s11 + $0x10] sm:$0xff]
        %v955 = vld [vmem:[%s11 + $0x18] sm:$0xff]
        %v956 = vld [vmem:[%s11 + $0x20] sm:$0xff]
        %v957 = vld [vmem:[%s11 + $0x28] sm:$0xff]
        %v958 = vld [vmem:[%s11 + $0x30] sm:$0xff]
        %v959 = vld [vmem:[%s11 + $0x38] sm:$0xff]
        %v960 = vld [vmem:[%s11 + $0x40] sm:$0xff]
        %v961 = vld [vmem:[%s11 + $0x48] sm:$0xff]
        %v962 = vld [vmem:[%s11 + $0x50] sm:$0xff]
        %v963 = vld [vmem:[%s11 + $0x58] sm:$0xff]
        %v964 = vld [vmem:[%s11 + $0x60] sm:$0xff]
        %v965 = vld [vmem:[%s11 + $0x68] sm:$0xff]
        %v966 = vld [vmem:[%s11 + $0x70] sm:$0xff]
        %v967 = vld [vmem:[%s11 + $0x78] sm:$0xff]
        %v968 = vld [vmem:[%s12] sm:$0x1]
        %v969 = vld [vmem:[#allocation2] sm:$0xff]
        // Predicated region
        $region169: #{tpu_custom_call.1} parent=139 // pred_check
          %p970 = pneg %p753
        $region170: #{tpu_custom_call.1} parent=139 // pred_check_branch
          %972 = sbr.rel (%p970) target = $region172
        $region171: #{tpu_custom_call.1} parent=139 // pred_region
          %s973 = smul.u32 0, 3
          %s974 = smul.addr %s973, 8
          %s975 = scalar_lea.vmem [#allocation4], %s974
          %v976 = vld [vmem:[%s975] sm:$0xff]
          %v977 = vld [vmem:[%s975 + $0x8] sm:$0xff]
          %v978 = vld [vmem:[%s975 + $0x10] sm:$0xff]
        $region172: #{tpu_custom_call.1} parent=139 // pred_fallthru
          %v979 = vphi 0, %v976
          %v980 = vphi 0, %v977
          %v981 = vphi 0, %v978
        %p982 = pneg %p753
        // Predicated region
        $region173: #{tpu_custom_call.1} parent=139 // pred_check
          _
        $region174: #{tpu_custom_call.1} parent=139 // pred_check_branch
          %984 = sbr.rel (%p753) target = $region176
        $region175: #{tpu_custom_call.1} parent=139 // pred_region
          %v986 = vperm.slane %v934, 0
          %988 = vmatpush.msra.mxu0 %v933
          %989 = vmatpush.msra.mxu0 %v932
          %990 = vmatpush.msra.mxu0 %v931
          %991 = vmatpush.msra.mxu0 %v930
          %992 = vmatpush.msra.mxu0 %v929
          %993 = vmatpush.msra.mxu0 %v928
          %994 = vmatpush.msra.mxu0 %v927
          %995 = vmatpush.msra.mxu0 %v926
          %996 = vmatpush.msra.mxu0 %v925
          %997 = vmatpush.msra.mxu0 %v924
          %998 = vmatpush.msra.mxu0 %v923
          %999 = vmatpush.msra.mxu0 %v922
          %1000 = vmatpush.msra.mxu0 %v921
          %1001 = vmatpush.msra.mxu0 %v920
          %1002 = vmatpush.msra.mxu0 %v919
          %1003 = vmatpush.msra.mxu0 %v918
          %1004 = vmatmul.f32.gmra.mxu0 %v969
          %v1005 = vpop.f32.mrf.mxu0
          %v1006 = vadd.f32 %v986, %v1005
          %1007 = vdwg.mxu0
          %vm1008 = vcmp.gt.f32.partialorder %v1006, 0.0
          %v1009 = vmin.f32 %v1006, 0.0
          %v1010 = vmul.f32 %v1009, 1.442695
          %v1011 = vpow.pop %v1010
          %v1012 = vsub.f32 %v1011, 1.0
          %v1013 = vsel %vm1008, %v1006, %v1012
          %v1015 = vperm.slane %v951, 0
          %1017 = vmatpush.msra.mxu0 %v950
          %1018 = vmatpush.msra.mxu0 %v949
          %1019 = vmatpush.msra.mxu0 %v948
          %1020 = vmatpush.msra.mxu0 %v947
          %1021 = vmatpush.msra.mxu0 %v946
          %1022 = vmatpush.msra.mxu0 %v945
          %1023 = vmatpush.msra.mxu0 %v944
          %1024 = vmatpush.msra.mxu0 %v943
          %1025 = vmatpush.msra.mxu0 %v942
          %1026 = vmatpush.msra.mxu0 %v941
          %1027 = vmatpush.msra.mxu0 %v940
          %1028 = vmatpush.msra.mxu0 %v939
          %1029 = vmatpush.msra.mxu0 %v938
          %1030 = vmatpush.msra.mxu0 %v937
          %1031 = vmatpush.msra.mxu0 %v936
          %1032 = vmatpush.msra.mxu0 %v935
          %1033 = vmatmul.f32.gmra.mxu0 %v1013
          %v1034 = vpop.f32.mrf.mxu0
          %v1035 = vadd.f32 %v1015, %v1034
          %1036 = vdwg.mxu0
          %vm1037 = vcmp.gt.f32.partialorder %v1035, 0.0
          %v1038 = vmin.f32 %v1035, 0.0
          %v1039 = vmul.f32 %v1038, 1.442695
          %v1040 = vpow.pop %v1039
          %v1041 = vsub.f32 %v1040, 1.0
          %v1042 = vsel %vm1037, %v1035, %v1041
          %v1044 = vperm.slane %v968, 0
          %1046 = vmatpush.msra.mxu0 %v967
          %1047 = vmatpush.msra.mxu0 %v966
          %1048 = vmatpush.msra.mxu0 %v965
          %1049 = vmatpush.msra.mxu0 %v964
          %1050 = vmatpush.msra.mxu0 %v963
          %1051 = vmatpush.msra.mxu0 %v962
          %1052 = vmatpush.msra.mxu0 %v961
          %1053 = vmatpush.msra.mxu0 %v960
          %1054 = vmatpush.msra.mxu0 %v959
          %1055 = vmatpush.msra.mxu0 %v958
          %1056 = vmatpush.msra.mxu0 %v957
          %1057 = vmatpush.msra.mxu0 %v956
          %1058 = vmatpush.msra.mxu0 %v955
          %1059 = vmatpush.msra.mxu0 %v954
          %1060 = vmatpush.msra.mxu0 %v953
          %1061 = vmatpush.msra.mxu0 %v952
          %1062 = vmatmul.f32.gmra.mxu0 %v1042
          %v1063 = vpop.f32.mrf.mxu0
          %v1064 = vadd.f32 %v1044, %v1063
          %1065 = vdwg.mxu0
          %vm1066 = vcmask 130048
          %v1068 = vsel %vm1066, %v1064, 0
          %1070 = vmatpush.msra.mxu0 0.0
          %1071 = vmatpush.msra.mxu0 0.0
          %1072 = vmatpush.msra.mxu0 0.0
          %1073 = vmatpush.msra.mxu0 0.0
          %1074 = vmatpush.msra.mxu0 0.0
          %1075 = vmatpush.msra.mxu0 0.0
          %1076 = vmatpush.msra.mxu0 0.0
          %1077 = vmatpush.msra.mxu0 0.0
          %1078 = vmatpush.msra.mxu0 0.0
          %1079 = vmatpush.msra.mxu0 0.0
          %1080 = vmatpush.msra.mxu0 0.0
          %1081 = vmatpush.msra.mxu0 0.0
          %1082 = vmatpush.msra.mxu0 0.0
          %1083 = vmatpush.msra.mxu0 0.0
          %1084 = vmatpush.msra.mxu0 %v866
          %1085 = vmatpush.msra.mxu0 %v863
          %1086 = vmatmul.f32.gmra.mxu0 %v1068
          %v1087 = vpop.f32.mrf.mxu0
          %v1088 = vadd.f32 0.0, %v1087
          %1089 = vdwg.mxu0
          %1090 = vmatpush.msra.mxu0 0.0
          %1091 = vmatpush.msra.mxu0 0.0
          %1092 = vmatpush.msra.mxu0 0.0
          %1093 = vmatpush.msra.mxu0 0.0
          %1094 = vmatpush.msra.mxu0 0.0
          %1095 = vmatpush.msra.mxu0 0.0
          %1096 = vmatpush.msra.mxu0 0.0
          %1097 = vmatpush.msra.mxu0 0.0
          %1098 = vmatpush.msra.mxu0 0.0
          %1099 = vmatpush.msra.mxu0 0.0
          %1100 = vmatpush.msra.mxu0 0.0
          %1101 = vmatpush.msra.mxu0 0.0
          %1102 = vmatpush.msra.mxu0 0.0
          %1103 = vmatpush.msra.mxu0 0.0
          %1104 = vmatpush.msra.mxu0 %v867
          %1105 = vmatpush.msra.mxu0 %v864
          %1106 = vmatmul.f32.gmra.mxu0 %v1068
          %v1107 = vpop.f32.mrf.mxu0
          %v1108 = vadd.f32 0.0, %v1107
          %1109 = vdwg.mxu0
          %1110 = vmatpush.msra.mxu0 0.0
          %1111 = vmatpush.msra.mxu0 0.0
          %1112 = vmatpush.msra.mxu0 0.0
          %1113 = vmatpush.msra.mxu0 0.0
          %1114 = vmatpush.msra.mxu0 0.0
          %1115 = vmatpush.msra.mxu0 0.0
          %1116 = vmatpush.msra.mxu0 0.0
          %1117 = vmatpush.msra.mxu0 0.0
          %1118 = vmatpush.msra.mxu0 0.0
          %1119 = vmatpush.msra.mxu0 0.0
          %1120 = vmatpush.msra.mxu0 0.0
          %1121 = vmatpush.msra.mxu0 0.0
          %1122 = vmatpush.msra.mxu0 0.0
          %1123 = vmatpush.msra.mxu0 0.0
          %1124 = vmatpush.msra.mxu0 %v868
          %1125 = vmatpush.msra.mxu0 %v865
          %1126 = vmatmul.f32.gmra.mxu0 %v1068
          %v1127 = vpop.f32.mrf.mxu0
          %v1128 = vadd.f32 0.0, %v1127
          %1129 = vdwg.mxu0
        $region176: #{tpu_custom_call.1} parent=139 // pred_fallthru
          %v1130 = vphi %v979, %v1088
          %v1131 = vphi %v980, %v1108
          %v1132 = vphi %v981, %v1128
        %s1133 = smul.u32 0, 3
        %s1134 = smul.addr %s1133, 8
        %s1135 = scalar_lea.vmem [#allocation3], %s1134
        %v1136 = vld [vmem:[%s1135] sm:$0xff]
        %v1137 = vld [vmem:[%s1135 + $0x8] sm:$0xff]
        %v1138 = vld [vmem:[%s1135 + $0x10] sm:$0xff]
        %v1139 = vadd.f32 %v1130, %v1136
        %v1140 = vadd.f32 %v1131, %v1137
        %v1141 = vadd.f32 %v1132, %v1138
        %v1143 = vperm.slane %v917, 0
        %v1144 = vperm.slane %v917, 1
        %v1145 = vperm.slane %v917, 2
        %1149 = vmatpush.msra.mxu0 %v914
        %1150 = vmatpush.msra.mxu0 %v911
        %1151 = vmatpush.msra.mxu0 %v908
        %1152 = vmatpush.msra.mxu0 %v905
        %1153 = vmatpush.msra.mxu0 %v902
        %1154 = vmatpush.msra.mxu0 %v899
        %1155 = vmatpush.msra.mxu0 %v896
        %1156 = vmatpush.msra.mxu0 %v893
        %1157 = vmatpush.msra.mxu0 %v890
        %1158 = vmatpush.msra.mxu0 %v887
        %1159 = vmatpush.msra.mxu0 %v884
        %1160 = vmatpush.msra.mxu0 %v881
        %1161 = vmatpush.msra.mxu0 %v878
        %1162 = vmatpush.msra.mxu0 %v875
        %1163 = vmatpush.msra.mxu0 %v872
        %1164 = vmatpush.msra.mxu0 %v869
        %1165 = vmatmul.f32.gmra.mxu0 %v969
        %v1166 = vpop.f32.mrf.mxu0
        %v1167 = vadd.f32 %v1143, %v1166
        %1168 = vdwg.mxu0
        %1169 = vmatpush.msra.mxu0 %v915
        %1170 = vmatpush.msra.mxu0 %v912
        %1171 = vmatpush.msra.mxu0 %v909
        %1172 = vmatpush.msra.mxu0 %v906
        %1173 = vmatpush.msra.mxu0 %v903
        %1174 = vmatpush.msra.mxu0 %v900
        %1175 = vmatpush.msra.mxu0 %v897
        %1176 = vmatpush.msra.mxu0 %v894
        %1177 = vmatpush.msra.mxu0 %v891
        %1178 = vmatpush.msra.mxu0 %v888
        %1179 = vmatpush.msra.mxu0 %v885
        %1180 = vmatpush.msra.mxu0 %v882
        %1181 = vmatpush.msra.mxu0 %v879
        %1182 = vmatpush.msra.mxu0 %v876
        %1183 = vmatpush.msra.mxu0 %v873
        %1184 = vmatpush.msra.mxu0 %v870
        %1185 = vmatmul.f32.gmra.mxu0 %v969
        %v1186 = vpop.f32.mrf.mxu0
        %v1187 = vadd.f32 %v1144, %v1186
        %1188 = vdwg.mxu0
        %1189 = vmatpush.msra.mxu0 %v916
        %1190 = vmatpush.msra.mxu0 %v913
        %1191 = vmatpush.msra.mxu0 %v910
        %1192 = vmatpush.msra.mxu0 %v907
        %1193 = vmatpush.msra.mxu0 %v904
        %1194 = vmatpush.msra.mxu0 %v901
        %1195 = vmatpush.msra.mxu0 %v898
        %1196 = vmatpush.msra.mxu0 %v895
        %1197 = vmatpush.msra.mxu0 %v892
        %1198 = vmatpush.msra.mxu0 %v889
        %1199 = vmatpush.msra.mxu0 %v886
        %1200 = vmatpush.msra.mxu0 %v883
        %1201 = vmatpush.msra.mxu0 %v880
        %1202 = vmatpush.msra.mxu0 %v877
        %1203 = vmatpush.msra.mxu0 %v874
        %1204 = vmatpush.msra.mxu0 %v871
        %1205 = vmatmul.f32.gmra.mxu0 %v969
        %v1206 = vpop.f32.mrf.mxu0
        %v1207 = vadd.f32 %v1145, %v1206
        %1208 = vdwg.mxu0
        %v1209 = vadd.f32 %v1139, %v1167
        %v1210 = vxor.u32 %v1209, 2147483648
        %v1211 = vmul.f32 %v1210, 1.442695
        %v1212 = vpow.pop %v1211
        %v1213 = vadd.f32 %v1212, 1.0
        %v1214 = vrcp.pop %v1213
        %v1215 = vmul.f32 %v1213, %v1214
        %v1216 = vsub.f32 1.0, %v1215
        %v1217 = vmul.f32 %v1214, %v1216
        %v1218 = vadd.f32 %v1214, %v1217
        %vm1219 = vweird.f32 %v1213
        %vm1220 = vweird.f32 %v1214
        %vm1221 = vmor %vm1219, %vm1220
        %v1222 = vsel %vm1221, %v1214, %v1218
        %v1223 = vand.u32 2147483647, %v1213
        %vm1224 = vcmp.eq.f32.partialorder %v1223, 8.507059e+37
        %v1225 = vand.u32 %v1213, 2147483648
        %v1226 = vor.u32 1.1754944e-38, %v1225
        %v1227 = vsel %vm1224, %v1226, %v1222
        %v1228 = vmul.f32 1.0, %v1227
        %v1229 = vadd.f32 %v1140, %v1187
        %v1230 = vxor.u32 %v1229, 2147483648
        %v1231 = vmul.f32 %v1230, 1.442695
        %v1232 = vpow.pop %v1231
        %v1233 = vadd.f32 %v1232, 1.0
        %v1234 = vrcp.pop %v1233
        %v1235 = vmul.f32 %v1233, %v1234
        %v1236 = vsub.f32 1.0, %v1235
        %v1237 = vmul.f32 %v1234, %v1236
        %v1238 = vadd.f32 %v1234, %v1237
        %vm1239 = vweird.f32 %v1233
        %vm1240 = vweird.f32 %v1234
        %vm1241 = vmor %vm1239, %vm1240
        %v1242 = vsel %vm1241, %v1234, %v1238
        %v1243 = vand.u32 2147483647, %v1233
        %vm1244 = vcmp.eq.f32.partialorder %v1243, 8.507059e+37
        %v1245 = vand.u32 %v1233, 2147483648
        %v1246 = vor.u32 1.1754944e-38, %v1245
        %v1247 = vsel %vm1244, %v1246, %v1242
        %v1248 = vmul.f32 1.0, %v1247
        %v1249 = vmul.f32 %v1228, %v1207
        %v1250 = vadd.f32 %v1141, %v1249
        %v1251 = vtanh.pop %v1250
        %v1252 = vsub.f32 1.0, %v1248
        %v1253 = vmul.f32 %v1252, %v1251
        %v1254 = vmul.f32 %v1248, %v969
        %v1255 = vadd.f32 %v1253, %v1254
        %1256 = vst [vmem:[%s618] sm:$0xff] %v1255
        %s1257 = sadd.s32 %s752, 1
        %p1258 = scmp.le.s32.totalorder %s1257, 4
        // Predicated region
        $region177: #{tpu_custom_call.1} parent=139 // pred_check
          %p1259 = pneg %p1258
        $region178: #{tpu_custom_call.1} parent=139 // pred_check_branch
          %1261 = sbr.rel (%p1259) target = $region180
        $region179: #{tpu_custom_call.1} parent=139 // pred_region
          %s1262 = smul.u32 1, 3
          %s1263 = smul.addr %s1262, 8
          %s1264 = scalar_lea.vmem [#allocation4], %s1263
          %v1265 = vld [vmem:[%s1264] sm:$0xff]
          %v1266 = vld [vmem:[%s1264 + $0x8] sm:$0xff]
          %v1267 = vld [vmem:[%s1264 + $0x10] sm:$0xff]
        $region180: #{tpu_custom_call.1} parent=139 // pred_fallthru
          %v1268 = vphi 0, %v1265
          %v1269 = vphi 0, %v1266
          %v1270 = vphi 0, %v1267
        %p1271 = pneg %p1258
        // Predicated region
        $region181: #{tpu_custom_call.1} parent=139 // pred_check
          _
        $region182: #{tpu_custom_call.1} parent=139 // pred_check_branch
          %1273 = sbr.rel (%p1258) target = $region184
        $region183: #{tpu_custom_call.1} parent=139 // pred_region
          %v1275 = vperm.slane %v934, 0
          %1277 = vmatpush.msra.mxu0 %v933
          %1278 = vmatpush.msra.mxu0 %v932
          %1279 = vmatpush.msra.mxu0 %v931
          %1280 = vmatpush.msra.mxu0 %v930
          %1281 = vmatpush.msra.mxu0 %v929
          %1282 = vmatpush.msra.mxu0 %v928
          %1283 = vmatpush.msra.mxu0 %v927
          %1284 = vmatpush.msra.mxu0 %v926
          %1285 = vmatpush.msra.mxu0 %v925
          %1286 = vmatpush.msra.mxu0 %v924
          %1287 = vmatpush.msra.mxu0 %v923
          %1288 = vmatpush.msra.mxu0 %v922
          %1289 = vmatpush.msra.mxu0 %v921
          %1290 = vmatpush.msra.mxu0 %v920
          %1291 = vmatpush.msra.mxu0 %v919
          %1292 = vmatpush.msra.mxu0 %v918
          %1293 = vmatmul.f32.gmra.mxu0 %v1255
          %v1294 = vpop.f32.mrf.mxu0
          %v1295 = vadd.f32 %v1275, %v1294
          %1296 = vdwg.mxu0
          %vm1297 = vcmp.gt.f32.partialorder %v1295, 0.0
          %v1298 = vmin.f32 %v1295, 0.0
          %v1299 = vmul.f32 %v1298, 1.442695
          %v1300 = vpow.pop %v1299
          %v1301 = vsub.f32 %v1300, 1.0
          %v1302 = vsel %vm1297, %v1295, %v1301
          %v1304 = vperm.slane %v951, 0
          %1306 = vmatpush.msra.mxu0 %v950
          %1307 = vmatpush.msra.mxu0 %v949
          %1308 = vmatpush.msra.mxu0 %v948
          %1309 = vmatpush.msra.mxu0 %v947
          %1310 = vmatpush.msra.mxu0 %v946
          %1311 = vmatpush.msra.mxu0 %v945
          %1312 = vmatpush.msra.mxu0 %v944
          %1313 = vmatpush.msra.mxu0 %v943
          %1314 = vmatpush.msra.mxu0 %v942
          %1315 = vmatpush.msra.mxu0 %v941
          %1316 = vmatpush.msra.mxu0 %v940
          %1317 = vmatpush.msra.mxu0 %v939
          %1318 = vmatpush.msra.mxu0 %v938
          %1319 = vmatpush.msra.mxu0 %v937
          %1320 = vmatpush.msra.mxu0 %v936
          %1321 = vmatpush.msra.mxu0 %v935
          %1322 = vmatmul.f32.gmra.mxu0 %v1302
          %v1323 = vpop.f32.mrf.mxu0
          %v1324 = vadd.f32 %v1304, %v1323
          %1325 = vdwg.mxu0
          %vm1326 = vcmp.gt.f32.partialorder %v1324, 0.0
          %v1327 = vmin.f32 %v1324, 0.0
          %v1328 = vmul.f32 %v1327, 1.442695
          %v1329 = vpow.pop %v1328
          %v1330 = vsub.f32 %v1329, 1.0
          %v1331 = vsel %vm1326, %v1324, %v1330
          %v1333 = vperm.slane %v968, 0
          %1335 = vmatpush.msra.mxu0 %v967
          %1336 = vmatpush.msra.mxu0 %v966
          %1337 = vmatpush.msra.mxu0 %v965
          %1338 = vmatpush.msra.mxu0 %v964
          %1339 = vmatpush.msra.mxu0 %v963
          %1340 = vmatpush.msra.mxu0 %v962
          %1341 = vmatpush.msra.mxu0 %v961
          %1342 = vmatpush.msra.mxu0 %v960
          %1343 = vmatpush.msra.mxu0 %v959
          %1344 = vmatpush.msra.mxu0 %v958
          %1345 = vmatpush.msra.mxu0 %v957
          %1346 = vmatpush.msra.mxu0 %v956
          %1347 = vmatpush.msra.mxu0 %v955
          %1348 = vmatpush.msra.mxu0 %v954
          %1349 = vmatpush.msra.mxu0 %v953
          %1350 = vmatpush.msra.mxu0 %v952
          %1351 = vmatmul.f32.gmra.mxu0 %v1331
          %v1352 = vpop.f32.mrf.mxu0
          %v1353 = vadd.f32 %v1333, %v1352
          %1354 = vdwg.mxu0
          %vm1355 = vcmask 130048
          %v1357 = vsel %vm1355, %v1353, 0
          %1359 = vmatpush.msra.mxu0 0.0
          %1360 = vmatpush.msra.mxu0 0.0
          %1361 = vmatpush.msra.mxu0 0.0
          %1362 = vmatpush.msra.mxu0 0.0
          %1363 = vmatpush.msra.mxu0 0.0
          %1364 = vmatpush.msra.mxu0 0.0
          %1365 = vmatpush.msra.mxu0 0.0
          %1366 = vmatpush.msra.mxu0 0.0
          %1367 = vmatpush.msra.mxu0 0.0
          %1368 = vmatpush.msra.mxu0 0.0
          %1369 = vmatpush.msra.mxu0 0.0
          %1370 = vmatpush.msra.mxu0 0.0
          %1371 = vmatpush.msra.mxu0 0.0
          %1372 = vmatpush.msra.mxu0 0.0
          %1373 = vmatpush.msra.mxu0 %v866
          %1374 = vmatpush.msra.mxu0 %v863
          %1375 = vmatmul.f32.gmra.mxu0 %v1357
          %v1376 = vpop.f32.mrf.mxu0
          %v1377 = vadd.f32 0.0, %v1376
          %1378 = vdwg.mxu0
          %1379 = vmatpush.msra.mxu0 0.0
          %1380 = vmatpush.msra.mxu0 0.0
          %1381 = vmatpush.msra.mxu0 0.0
          %1382 = vmatpush.msra.mxu0 0.0
          %1383 = vmatpush.msra.mxu0 0.0
          %1384 = vmatpush.msra.mxu0 0.0
          %1385 = vmatpush.msra.mxu0 0.0
          %1386 = vmatpush.msra.mxu0 0.0
          %1387 = vmatpush.msra.mxu0 0.0
          %1388 = vmatpush.msra.mxu0 0.0
          %1389 = vmatpush.msra.mxu0 0.0
          %1390 = vmatpush.msra.mxu0 0.0
          %1391 = vmatpush.msra.mxu0 0.0
          %1392 = vmatpush.msra.mxu0 0.0
          %1393 = vmatpush.msra.mxu0 %v867
          %1394 = vmatpush.msra.mxu0 %v864
          %1395 = vmatmul.f32.gmra.mxu0 %v1357
          %v1396 = vpop.f32.mrf.mxu0
          %v1397 = vadd.f32 0.0, %v1396
          %1398 = vdwg.mxu0
          %1399 = vmatpush.msra.mxu0 0.0
          %1400 = vmatpush.msra.mxu0 0.0
          %1401 = vmatpush.msra.mxu0 0.0
          %1402 = vmatpush.msra.mxu0 0.0
          %1403 = vmatpush.msra.mxu0 0.0
          %1404 = vmatpush.msra.mxu0 0.0
          %1405 = vmatpush.msra.mxu0 0.0
          %1406 = vmatpush.msra.mxu0 0.0
          %1407 = vmatpush.msra.mxu0 0.0
          %1408 = vmatpush.msra.mxu0 0.0
          %1409 = vmatpush.msra.mxu0 0.0
          %1410 = vmatpush.msra.mxu0 0.0
          %1411 = vmatpush.msra.mxu0 0.0
          %1412 = vmatpush.msra.mxu0 0.0
          %1413 = vmatpush.msra.mxu0 %v868
          %1414 = vmatpush.msra.mxu0 %v865
          %1415 = vmatmul.f32.gmra.mxu0 %v1357
          %v1416 = vpop.f32.mrf.mxu0
          %v1417 = vadd.f32 0.0, %v1416
          %1418 = vdwg.mxu0
        $region184: #{tpu_custom_call.1} parent=139 // pred_fallthru
          %v1419 = vphi %v1268, %v1377
          %v1420 = vphi %v1269, %v1397
          %v1421 = vphi %v1270, %v1417
        %s1422 = smul.u32 1, 3
        %s1423 = smul.addr %s1422, 8
        %s1424 = scalar_lea.vmem [#allocation3], %s1423
        %v1425 = vld [vmem:[%s1424] sm:$0xff]
        %v1426 = vld [vmem:[%s1424 + $0x8] sm:$0xff]
        %v1427 = vld [vmem:[%s1424 + $0x10] sm:$0xff]
        %v1428 = vadd.f32 %v1419, %v1425
        %v1429 = vadd.f32 %v1420, %v1426
        %v1430 = vadd.f32 %v1421, %v1427
        %1431 = vmatpush.msra.mxu0 %v914
        %1432 = vmatpush.msra.mxu0 %v911
        %1433 = vmatpush.msra.mxu0 %v908
        %1434 = vmatpush.msra.mxu0 %v905
        %1435 = vmatpush.msra.mxu0 %v902
        %1436 = vmatpush.msra.mxu0 %v899
        %1437 = vmatpush.msra.mxu0 %v896
        %1438 = vmatpush.msra.mxu0 %v893
        %1439 = vmatpush.msra.mxu0 %v890
        %1440 = vmatpush.msra.mxu0 %v887
        %1441 = vmatpush.msra.mxu0 %v884
        %1442 = vmatpush.msra.mxu0 %v881
        %1443 = vmatpush.msra.mxu0 %v878
        %1444 = vmatpush.msra.mxu0 %v875
        %1445 = vmatpush.msra.mxu0 %v872
        %1446 = vmatpush.msra.mxu0 %v869
        %1447 = vmatmul.f32.gmra.mxu0 %v1255
        %v1448 = vpop.f32.mrf.mxu0
        %v1449 = vadd.f32 %v1143, %v1448
        %1450 = vdwg.mxu0
        %1451 = vmatpush.msra.mxu0 %v915
        %1452 = vmatpush.msra.mxu0 %v912
        %1453 = vmatpush.msra.mxu0 %v909
        %1454 = vmatpush.msra.mxu0 %v906
        %1455 = vmatpush.msra.mxu0 %v903
        %1456 = vmatpush.msra.mxu0 %v900
        %1457 = vmatpush.msra.mxu0 %v897
        %1458 = vmatpush.msra.mxu0 %v894
        %1459 = vmatpush.msra.mxu0 %v891
        %1460 = vmatpush.msra.mxu0 %v888
        %1461 = vmatpush.msra.mxu0 %v885
        %1462 = vmatpush.msra.mxu0 %v882
        %1463 = vmatpush.msra.mxu0 %v879
        %1464 = vmatpush.msra.mxu0 %v876
        %1465 = vmatpush.msra.mxu0 %v873
        %1466 = vmatpush.msra.mxu0 %v870
        %1467 = vmatmul.f32.gmra.mxu0 %v1255
        %v1468 = vpop.f32.mrf.mxu0
        %v1469 = vadd.f32 %v1144, %v1468
        %1470 = vdwg.mxu0
        %1471 = vmatpush.msra.mxu0 %v916
        %1472 = vmatpush.msra.mxu0 %v913
        %1473 = vmatpush.msra.mxu0 %v910
        %1474 = vmatpush.msra.mxu0 %v907
        %1475 = vmatpush.msra.mxu0 %v904
        %1476 = vmatpush.msra.mxu0 %v901
        %1477 = vmatpush.msra.mxu0 %v898
        %1478 = vmatpush.msra.mxu0 %v895
        %1479 = vmatpush.msra.mxu0 %v892
        %1480 = vmatpush.msra.mxu0 %v889
        %1481 = vmatpush.msra.mxu0 %v886
        %1482 = vmatpush.msra.mxu0 %v883
        %1483 = vmatpush.msra.mxu0 %v880
        %1484 = vmatpush.msra.mxu0 %v877
        %1485 = vmatpush.msra.mxu0 %v874
        %1486 = vmatpush.msra.mxu0 %v871
        %1487 = vmatmul.f32.gmra.mxu0 %v1255
        %v1488 = vpop.f32.mrf.mxu0
        %v1489 = vadd.f32 %v1145, %v1488
        %1490 = vdwg.mxu0
        %v1491 = vadd.f32 %v1428, %v1449
        %v1492 = vxor.u32 %v1491, 2147483648
        %v1493 = vmul.f32 %v1492, 1.442695
        %v1494 = vpow.pop %v1493
        %v1495 = vadd.f32 %v1494, 1.0
        %v1496 = vrcp.pop %v1495
        %v1497 = vmul.f32 %v1495, %v1496
        %v1498 = vsub.f32 1.0, %v1497
        %v1499 = vmul.f32 %v1496, %v1498
        %v1500 = vadd.f32 %v1496, %v1499
        %vm1501 = vweird.f32 %v1495
        %vm1502 = vweird.f32 %v1496
        %vm1503 = vmor %vm1501, %vm1502
        %v1504 = vsel %vm1503, %v1496, %v1500
        %v1505 = vand.u32 2147483647, %v1495
        %vm1506 = vcmp.eq.f32.partialorder %v1505, 8.507059e+37
        %v1507 = vand.u32 %v1495, 2147483648
        %v1508 = vor.u32 1.1754944e-38, %v1507
        %v1509 = vsel %vm1506, %v1508, %v1504
        %v1510 = vmul.f32 1.0, %v1509
        %v1511 = vadd.f32 %v1429, %v1469
        %v1512 = vxor.u32 %v1511, 2147483648
        %v1513 = vmul.f32 %v1512, 1.442695
        %v1514 = vpow.pop %v1513
        %v1515 = vadd.f32 %v1514, 1.0
        %v1516 = vrcp.pop %v1515
        %v1517 = vmul.f32 %v1515, %v1516
        %v1518 = vsub.f32 1.0, %v1517
        %v1519 = vmul.f32 %v1516, %v1518
        %v1520 = vadd.f32 %v1516, %v1519
        %vm1521 = vweird.f32 %v1515
        %vm1522 = vweird.f32 %v1516
        %vm1523 = vmor %vm1521, %vm1522
        %v1524 = vsel %vm1523, %v1516, %v1520
        %v1525 = vand.u32 2147483647, %v1515
        %vm1526 = vcmp.eq.f32.partialorder %v1525, 8.507059e+37
        %v1527 = vand.u32 %v1515, 2147483648
        %v1528 = vor.u32 1.1754944e-38, %v1527
        %v1529 = vsel %vm1526, %v1528, %v1524
        %v1530 = vmul.f32 1.0, %v1529
        %v1531 = vmul.f32 %v1510, %v1489
        %v1532 = vadd.f32 %v1430, %v1531
        %v1533 = vtanh.pop %v1532
        %v1534 = vsub.f32 1.0, %v1530
        %v1535 = vmul.f32 %v1534, %v1533
        %v1536 = vmul.f32 %v1530, %v1255
        %v1537 = vadd.f32 %v1535, %v1536
        %s1538 = scalar_lea.vmem %s618, 8 [#allocation13]
        %1539 = vst [vmem:[%s1538] sm:$0xff] %v1537
        %s1540 = sadd.s32 %s752, 2
        %p1541 = scmp.le.s32.totalorder %s1540, 4
        // Predicated region
        $region185: #{tpu_custom_call.1} parent=139 // pred_check
          %p1542 = pneg %p1541
        $region186: #{tpu_custom_call.1} parent=139 // pred_check_branch
          %1544 = sbr.rel (%p1542) target = $region188
        $region187: #{tpu_custom_call.1} parent=139 // pred_region
          %s1545 = smul.u32 2, 3
          %s1546 = smul.addr %s1545, 8
          %s1547 = scalar_lea.vmem [#allocation4], %s1546
          %v1548 = vld [vmem:[%s1547] sm:$0xff]
          %v1549 = vld [vmem:[%s1547 + $0x8] sm:$0xff]
          %v1550 = vld [vmem:[%s1547 + $0x10] sm:$0xff]
        $region188: #{tpu_custom_call.1} parent=139 // pred_fallthru
          %v1551 = vphi 0, %v1548
          %v1552 = vphi 0, %v1549
          %v1553 = vphi 0, %v1550
        %p1554 = pneg %p1541
        // Predicated region
        $region189: #{tpu_custom_call.1} parent=139 // pred_check
          _
        $region190: #{tpu_custom_call.1} parent=139 // pred_check_branch
          %1556 = sbr.rel (%p1541) target = $region192
        $region191: #{tpu_custom_call.1} parent=139 // pred_region
          %v1558 = vperm.slane %v934, 0
          %1560 = vmatpush.msra.mxu0 %v933
          %1561 = vmatpush.msra.mxu0 %v932
          %1562 = vmatpush.msra.mxu0 %v931
          %1563 = vmatpush.msra.mxu0 %v930
          %1564 = vmatpush.msra.mxu0 %v929
          %1565 = vmatpush.msra.mxu0 %v928
          %1566 = vmatpush.msra.mxu0 %v927
          %1567 = vmatpush.msra.mxu0 %v926
          %1568 = vmatpush.msra.mxu0 %v925
          %1569 = vmatpush.msra.mxu0 %v924
          %1570 = vmatpush.msra.mxu0 %v923
          %1571 = vmatpush.msra.mxu0 %v922
          %1572 = vmatpush.msra.mxu0 %v921
          %1573 = vmatpush.msra.mxu0 %v920
          %1574 = vmatpush.msra.mxu0 %v919
          %1575 = vmatpush.msra.mxu0 %v918
          %1576 = vmatmul.f32.gmra.mxu0 %v1537
          %v1577 = vpop.f32.mrf.mxu0
          %v1578 = vadd.f32 %v1558, %v1577
          %1579 = vdwg.mxu0
          %vm1580 = vcmp.gt.f32.partialorder %v1578, 0.0
          %v1581 = vmin.f32 %v1578, 0.0
          %v1582 = vmul.f32 %v1581, 1.442695
          %v1583 = vpow.pop %v1582
          %v1584 = vsub.f32 %v1583, 1.0
          %v1585 = vsel %vm1580, %v1578, %v1584
          %v1587 = vperm.slane %v951, 0
          %1589 = vmatpush.msra.mxu0 %v950
          %1590 = vmatpush.msra.mxu0 %v949
          %1591 = vmatpush.msra.mxu0 %v948
          %1592 = vmatpush.msra.mxu0 %v947
          %1593 = vmatpush.msra.mxu0 %v946
          %1594 = vmatpush.msra.mxu0 %v945
          %1595 = vmatpush.msra.mxu0 %v944
          %1596 = vmatpush.msra.mxu0 %v943
          %1597 = vmatpush.msra.mxu0 %v942
          %1598 = vmatpush.msra.mxu0 %v941
          %1599 = vmatpush.msra.mxu0 %v940
          %1600 = vmatpush.msra.mxu0 %v939
          %1601 = vmatpush.msra.mxu0 %v938
          %1602 = vmatpush.msra.mxu0 %v937
          %1603 = vmatpush.msra.mxu0 %v936
          %1604 = vmatpush.msra.mxu0 %v935
          %1605 = vmatmul.f32.gmra.mxu0 %v1585
          %v1606 = vpop.f32.mrf.mxu0
          %v1607 = vadd.f32 %v1587, %v1606
          %1608 = vdwg.mxu0
          %vm1609 = vcmp.gt.f32.partialorder %v1607, 0.0
          %v1610 = vmin.f32 %v1607, 0.0
          %v1611 = vmul.f32 %v1610, 1.442695
          %v1612 = vpow.pop %v1611
          %v1613 = vsub.f32 %v1612, 1.0
          %v1614 = vsel %vm1609, %v1607, %v1613
          %v1616 = vperm.slane %v968, 0
          %1618 = vmatpush.msra.mxu0 %v967
          %1619 = vmatpush.msra.mxu0 %v966
          %1620 = vmatpush.msra.mxu0 %v965
          %1621 = vmatpush.msra.mxu0 %v964
          %1622 = vmatpush.msra.mxu0 %v963
          %1623 = vmatpush.msra.mxu0 %v962
          %1624 = vmatpush.msra.mxu0 %v961
          %1625 = vmatpush.msra.mxu0 %v960
          %1626 = vmatpush.msra.mxu0 %v959
          %1627 = vmatpush.msra.mxu0 %v958
          %1628 = vmatpush.msra.mxu0 %v957
          %1629 = vmatpush.msra.mxu0 %v956
          %1630 = vmatpush.msra.mxu0 %v955
          %1631 = vmatpush.msra.mxu0 %v954
          %1632 = vmatpush.msra.mxu0 %v953
          %1633 = vmatpush.msra.mxu0 %v952
          %1634 = vmatmul.f32.gmra.mxu0 %v1614
          %v1635 = vpop.f32.mrf.mxu0
          %v1636 = vadd.f32 %v1616, %v1635
          %1637 = vdwg.mxu0
          %vm1638 = vcmask 130048
          %v1640 = vsel %vm1638, %v1636, 0
          %1642 = vmatpush.msra.mxu0 0.0
          %1643 = vmatpush.msra.mxu0 0.0
          %1644 = vmatpush.msra.mxu0 0.0
          %1645 = vmatpush.msra.mxu0 0.0
          %1646 = vmatpush.msra.mxu0 0.0
          %1647 = vmatpush.msra.mxu0 0.0
          %1648 = vmatpush.msra.mxu0 0.0
          %1649 = vmatpush.msra.mxu0 0.0
          %1650 = vmatpush.msra.mxu0 0.0
          %1651 = vmatpush.msra.mxu0 0.0
          %1652 = vmatpush.msra.mxu0 0.0
          %1653 = vmatpush.msra.mxu0 0.0
          %1654 = vmatpush.msra.mxu0 0.0
          %1655 = vmatpush.msra.mxu0 0.0
          %1656 = vmatpush.msra.mxu0 %v866
          %1657 = vmatpush.msra.mxu0 %v863
          %1658 = vmatmul.f32.gmra.mxu0 %v1640
          %v1659 = vpop.f32.mrf.mxu0
          %v1660 = vadd.f32 0.0, %v1659
          %1661 = vdwg.mxu0
          %1662 = vmatpush.msra.mxu0 0.0
          %1663 = vmatpush.msra.mxu0 0.0
          %1664 = vmatpush.msra.mxu0 0.0
          %1665 = vmatpush.msra.mxu0 0.0
          %1666 = vmatpush.msra.mxu0 0.0
          %1667 = vmatpush.msra.mxu0 0.0
          %1668 = vmatpush.msra.mxu0 0.0
          %1669 = vmatpush.msra.mxu0 0.0
          %1670 = vmatpush.msra.mxu0 0.0
          %1671 = vmatpush.msra.mxu0 0.0
          %1672 = vmatpush.msra.mxu0 0.0
          %1673 = vmatpush.msra.mxu0 0.0
          %1674 = vmatpush.msra.mxu0 0.0
          %1675 = vmatpush.msra.mxu0 0.0
          %1676 = vmatpush.msra.mxu0 %v867
          %1677 = vmatpush.msra.mxu0 %v864
          %1678 = vmatmul.f32.gmra.mxu0 %v1640
          %v1679 = vpop.f32.mrf.mxu0
          %v1680 = vadd.f32 0.0, %v1679
          %1681 = vdwg.mxu0
          %1682 = vmatpush.msra.mxu0 0.0
          %1683 = vmatpush.msra.mxu0 0.0
          %1684 = vmatpush.msra.mxu0 0.0
          %1685 = vmatpush.msra.mxu0 0.0
          %1686 = vmatpush.msra.mxu0 0.0
          %1687 = vmatpush.msra.mxu0 0.0
          %1688 = vmatpush.msra.mxu0 0.0
          %1689 = vmatpush.msra.mxu0 0.0
          %1690 = vmatpush.msra.mxu0 0.0
          %1691 = vmatpush.msra.mxu0 0.0
          %1692 = vmatpush.msra.mxu0 0.0
          %1693 = vmatpush.msra.mxu0 0.0
          %1694 = vmatpush.msra.mxu0 0.0
          %1695 = vmatpush.msra.mxu0 0.0
          %1696 = vmatpush.msra.mxu0 %v868
          %1697 = vmatpush.msra.mxu0 %v865
          %1698 = vmatmul.f32.gmra.mxu0 %v1640
          %v1699 = vpop.f32.mrf.mxu0
          %v1700 = vadd.f32 0.0, %v1699
          %1701 = vdwg.mxu0
        $region192: #{tpu_custom_call.1} parent=139 // pred_fallthru
          %v1702 = vphi %v1551, %v1660
          %v1703 = vphi %v1552, %v1680
          %v1704 = vphi %v1553, %v1700
        %s1705 = smul.u32 2, 3
        %s1706 = smul.addr %s1705, 8
        %s1707 = scalar_lea.vmem [#allocation3], %s1706
        %v1708 = vld [vmem:[%s1707] sm:$0xff]
        %v1709 = vld [vmem:[%s1707 + $0x8] sm:$0xff]
        %v1710 = vld [vmem:[%s1707 + $0x10] sm:$0xff]
        %v1711 = vadd.f32 %v1702, %v1708
        %v1712 = vadd.f32 %v1703, %v1709
        %v1713 = vadd.f32 %v1704, %v1710
        %1714 = vmatpush.msra.mxu0 %v914
        %1715 = vmatpush.msra.mxu0 %v911
        %1716 = vmatpush.msra.mxu0 %v908
        %1717 = vmatpush.msra.mxu0 %v905
        %1718 = vmatpush.msra.mxu0 %v902
        %1719 = vmatpush.msra.mxu0 %v899
        %1720 = vmatpush.msra.mxu0 %v896
        %1721 = vmatpush.msra.mxu0 %v893
        %1722 = vmatpush.msra.mxu0 %v890
        %1723 = vmatpush.msra.mxu0 %v887
        %1724 = vmatpush.msra.mxu0 %v884
        %1725 = vmatpush.msra.mxu0 %v881
        %1726 = vmatpush.msra.mxu0 %v878
        %1727 = vmatpush.msra.mxu0 %v875
        %1728 = vmatpush.msra.mxu0 %v872
        %1729 = vmatpush.msra.mxu0 %v869
        %1730 = vmatmul.f32.gmra.mxu0 %v1537
        %v1731 = vpop.f32.mrf.mxu0
        %v1732 = vadd.f32 %v1143, %v1731
        %1733 = vdwg.mxu0
        %1734 = vmatpush.msra.mxu0 %v915
        %1735 = vmatpush.msra.mxu0 %v912
        %1736 = vmatpush.msra.mxu0 %v909
        %1737 = vmatpush.msra.mxu0 %v906
        %1738 = vmatpush.msra.mxu0 %v903
        %1739 = vmatpush.msra.mxu0 %v900
        %1740 = vmatpush.msra.mxu0 %v897
        %1741 = vmatpush.msra.mxu0 %v894
        %1742 = vmatpush.msra.mxu0 %v891
        %1743 = vmatpush.msra.mxu0 %v888
        %1744 = vmatpush.msra.mxu0 %v885
        %1745 = vmatpush.msra.mxu0 %v882
        %1746 = vmatpush.msra.mxu0 %v879
        %1747 = vmatpush.msra.mxu0 %v876
        %1748 = vmatpush.msra.mxu0 %v873
        %1749 = vmatpush.msra.mxu0 %v870
        %1750 = vmatmul.f32.gmra.mxu0 %v1537
        %v1751 = vpop.f32.mrf.mxu0
        %v1752 = vadd.f32 %v1144, %v1751
        %1753 = vdwg.mxu0
        %1754 = vmatpush.msra.mxu0 %v916
        %1755 = vmatpush.msra.mxu0 %v913
        %1756 = vmatpush.msra.mxu0 %v910
        %1757 = vmatpush.msra.mxu0 %v907
        %1758 = vmatpush.msra.mxu0 %v904
        %1759 = vmatpush.msra.mxu0 %v901
        %1760 = vmatpush.msra.mxu0 %v898
        %1761 = vmatpush.msra.mxu0 %v895
        %1762 = vmatpush.msra.mxu0 %v892
        %1763 = vmatpush.msra.mxu0 %v889
        %1764 = vmatpush.msra.mxu0 %v886
        %1765 = vmatpush.msra.mxu0 %v883
        %1766 = vmatpush.msra.mxu0 %v880
        %1767 = vmatpush.msra.mxu0 %v877
        %1768 = vmatpush.msra.mxu0 %v874
        %1769 = vmatpush.msra.mxu0 %v871
        %1770 = vmatmul.f32.gmra.mxu0 %v1537
        %v1771 = vpop.f32.mrf.mxu0
        %v1772 = vadd.f32 %v1145, %v1771
        %1773 = vdwg.mxu0
        %v1774 = vadd.f32 %v1711, %v1732
        %v1775 = vxor.u32 %v1774, 2147483648
        %v1776 = vmul.f32 %v1775, 1.442695
        %v1777 = vpow.pop %v1776
        %v1778 = vadd.f32 %v1777, 1.0
        %v1779 = vrcp.pop %v1778
        %v1780 = vmul.f32 %v1778, %v1779
        %v1781 = vsub.f32 1.0, %v1780
        %v1782 = vmul.f32 %v1779, %v1781
        %v1783 = vadd.f32 %v1779, %v1782
        %vm1784 = vweird.f32 %v1778
        %vm1785 = vweird.f32 %v1779
        %vm1786 = vmor %vm1784, %vm1785
        %v1787 = vsel %vm1786, %v1779, %v1783
        %v1788 = vand.u32 2147483647, %v1778
        %vm1789 = vcmp.eq.f32.partialorder %v1788, 8.507059e+37
        %v1790 = vand.u32 %v1778, 2147483648
        %v1791 = vor.u32 1.1754944e-38, %v1790
        %v1792 = vsel %vm1789, %v1791, %v1787
        %v1793 = vmul.f32 1.0, %v1792
        %v1794 = vadd.f32 %v1712, %v1752
        %v1795 = vxor.u32 %v1794, 2147483648
        %v1796 = vmul.f32 %v1795, 1.442695
        %v1797 = vpow.pop %v1796
        %v1798 = vadd.f32 %v1797, 1.0
        %v1799 = vrcp.pop %v1798
        %v1800 = vmul.f32 %v1798, %v1799
        %v1801 = vsub.f32 1.0, %v1800
        %v1802 = vmul.f32 %v1799, %v1801
        %v1803 = vadd.f32 %v1799, %v1802
        %vm1804 = vweird.f32 %v1798
        %vm1805 = vweird.f32 %v1799
        %vm1806 = vmor %vm1804, %vm1805
        %v1807 = vsel %vm1806, %v1799, %v1803
        %v1808 = vand.u32 2147483647, %v1798
        %vm1809 = vcmp.eq.f32.partialorder %v1808, 8.507059e+37
        %v1810 = vand.u32 %v1798, 2147483648
        %v1811 = vor.u32 1.1754944e-38, %v1810
        %v1812 = vsel %vm1809, %v1811, %v1807
        %v1813 = vmul.f32 1.0, %v1812
        %v1814 = vmul.f32 %v1793, %v1772
        %v1815 = vadd.f32 %v1713, %v1814
        %v1816 = vtanh.pop %v1815
        %v1817 = vsub.f32 1.0, %v1813
        %v1818 = vmul.f32 %v1817, %v1816
        %v1819 = vmul.f32 %v1813, %v1537
        %v1820 = vadd.f32 %v1818, %v1819
        %s1821 = scalar_lea.vmem %s618, 16 [#allocation13]
        %1822 = vst [vmem:[%s1821] sm:$0xff] %v1820
        %1823 = vst [vmem:[#allocation2] sm:$0xff] %v1820
        %s1824 = sand.u32 %s338, 1
        %s1825 = scalar_lea.sflag [#allocation9], %s1824
        %s1826 = sand.u32 %s338, 1
        %s1827 = smul.addr %s1826, 24
        %s1828 = scalar_lea.vmem [#allocation13], %s1827
        // Predicated region
        $region193: #{tpu_custom_call.1} parent=139 // pred_check
          %p1829 = pneg %p348
        $region194: #{tpu_custom_call.1} parent=139 // pred_check_branch
          %1831 = sbr.rel (%p1829) target = $region196
        $region195: #{tpu_custom_call.1} parent=139 // pred_region
          %s1832 = smul.u32 3, %s34
          %1834 = vsyncadd %s1825, 0
          %s1835 = smul.addr %s1832, 2
          %s1836 = sadd.s32 %s33, %s1835
          %s1837 = smul.addr %s1836, 8
          %s1838 = scalar_lea.hbm %s13, %s1837
          %s1839 = sshll.u32 %s1828, 4
          %s1840 = int_to_ptr.vmem [resolvable:$true] %s1839
          %s1841 = sshll.u32 %s1838, 4
          %s1842 = int_to_ptr.hbm [resolvable:$true] %s1841
          %1847 = dma.vmem_to_hbm [thread:$0]  %s1840, 384, %s1842, %s1825, 128, 256, 8
        $region196: #{tpu_custom_call.1} parent=139 // pred_fallthru
          _
      $region140: #{tpu_custom_call.1} parent=5 // pred_fallthru
        _
      %p1848 = scmp.le.s32.totalorder 2, %s24
      // Predicated region
      $region197: #{tpu_custom_call.1} parent=5 // pred_check
        %p1849 = pneg %p1848
      $region198: #{tpu_custom_call.1} parent=5 // pred_check_branch
        %1851 = sbr.rel (%p1849) target = $region200
      $region199: #{tpu_custom_call.1} parent=5 // pred_region
        %s1852 = ssub.s32 %s24, 2
        // Predicated region
        $region201: #{tpu_custom_call.1} parent=199 // pred_check
          %p1853 = pneg %p354
        $region202: #{tpu_custom_call.1} parent=199 // pred_check_branch
          %1855 = sbr.rel (%p1853) target = $region204
        $region203: #{tpu_custom_call.1} parent=199 // pred_region
          %s1856 = sand.u32 %s339, 1
          %s1857 = scalar_lea.sflag [#allocation9], %s1856
          %s1858 = sand.u32 %s339, 1
          %s1859 = smul.addr %s1858, 24
          %s1860 = scalar_lea.vmem [#allocation13], %s1859
          %1862 = dma.done %s1857, 384
        $region204: #{tpu_custom_call.1} parent=199 // pred_fallthru
          _
      $region200: #{tpu_custom_call.1} parent=5 // pred_fallthru
        _
    $region6: #{tpu_custom_call.1} parent=1 // loop_footer
      %s28 = sadd.s32 1, %s24
    $region7: #{tpu_custom_call.1} parent=1 // loop_footer_branch
      %23 = sbr.rel target = $region3
    $region8: #{tpu_custom_call.1} parent=1 // loop_exit
      _
    %1863 = vsyncpa [#allocation8], 1
    %s1864 = scalar_lea.sflag [#allocation8], 1
    %1865 = vsyncpa %s1864, 1
    %1866 = vsyncpa [#allocation11], 1
    %1867 = vsyncpa [#allocation9], 1
    %s1868 = scalar_lea.sflag [#allocation9], 1
    %1869 = vsyncpa %s1868, 1

</llo_original>
